<compile_context>
chip_gen: v7x
topology: tpu7x:2x2x1
jax: 0.10.0
libtpu: 0.0.40
codegen_flags: <defaults>
</compile_context>

<pallas_src>
import functools

import jax
import jax.numpy as jnp
from jax.experimental import pallas as pl
from jax.experimental.pallas import tpu as pltpu

C_IN = 960   # conv2d58 in_channels / conv2d59 out_channels
C_MID = 240  # conv2d58 out_channels / conv2d59 in_channels


def _mlp_kernel(x_ref, w1_ref, b_ref, w2_ref, o_ref):
    # x_ref:  [M, 960]  f32      w1_ref: [960, 240]  bf16
    # b_ref:  [2, cols] f32      (row 0: b1 in cols [0, 240); row 1: b2 shard)
    # w2_ref: [240, cols] bf16   o_ref:  [M, cols]   f32
    x = x_ref[...]                                   # stays f32 (free accuracy)
    h = jnp.dot(x, w1_ref[...], preferred_element_type=jnp.float32)
    h = jnp.maximum(h + b_ref[0:1, :C_MID], 0.0)     # bias + ReLU, f32
    o = jnp.dot(h, w2_ref[...], preferred_element_type=jnp.float32)
    o_ref[...] = (o + b_ref[1:2, :]).astype(o_ref.dtype)


def _round_up(x, m):
    return ((x + m - 1) // m) * m


def _num_col_shards():
    """2 output-column shards on v7x (2 TCs/chip), 1 elsewhere."""
    try:
        kind = jax.devices()[0].device_kind.lower()
    except Exception:
        return 1
    return 2 if ("v7" in kind or "tpu7" in kind) else 1


def prepare_params(w1_conv, b1, w2_conv, b2, num_col_shards=1):
    """One-time (model-init) weight prep: reshape, transpose, cast, pack biases.

    Keeps all reshapes/transposes/casts OFF the per-call forward path so the
    forward only DMAs bf16 weight bytes and one packed bias buffer.
    """
    shards = max(int(num_col_shards), 1)
    cols = C_IN if shards == 1 else _round_up(pl.cdiv(C_IN, shards), 128)
    c_pad = cols * shards

    w1 = jnp.transpose(w1_conv.reshape(C_MID, C_IN), (1, 0)).astype(jnp.bfloat16)   # [960, 240]
    w2 = jnp.transpose(w2_conv.reshape(C_IN, C_MID), (1, 0)).astype(jnp.float32)    # [240, 960]
    w2 = jnp.pad(w2, ((0, 0), (0, c_pad - C_IN))).astype(jnp.bfloat16)              # [240, c_pad]

    # Packed bias buffer [2, c_pad]:
    #  row 0: b1 replicated at every shard's column origin, so each (2, cols)
    #         bias block starts with the full b1 regardless of the shard index.
    #  row 1: b2 (zero-padded), column-sharded exactly like w2 / the output.
    bias = jnp.zeros((2, c_pad), jnp.float32)
    for s in range(shards):
        bias = bias.at[0, s * cols:s * cols + C_MID].set(b1.astype(jnp.float32))
    bias = bias.at[1, :C_IN].set(b2.astype(jnp.float32))

    return w1, bias, w2, cols


def conv_relu_conv(x_nchw, w1, bias, w2, *, cols):
    """x_nchw: [N, 960, 1, 1] f32; params as produced by prepare_params()."""
    N, C, H, W = x_nchw.shape
    assert C == C_IN
    # This module always has H = W = 1, so NCHW -> [N*H*W, C] is a pure reshape.
    assert H == 1 and W == 1
    M = N * H * W
    x2d = x_nchw.reshape(M, C)

    c_pad = w2.shape[1]
    shards = c_pad // cols
    assert shards * cols == c_pad and bias.shape == (2, c_pad)

    flops = 4 * M * C_IN * C_MID                      # two matmuls, 2*M*K*N each
    bytes_accessed = ((w1.size + w2.size) * 2         # bf16 weights
                      + (x2d.size + bias.size + M * c_pad) * 4)  # f32 act/bias/out

    out2d = pl.pallas_call(
        _mlp_kernel,
        out_shape=jax.ShapeDtypeStruct((M, c_pad), jnp.float32),
        grid_spec=pltpu.PrefetchScalarGridSpec(
            num_scalar_prefetch=0,
            grid=(shards,),
            in_specs=[
                pl.BlockSpec((M, C_IN), lambda j: (0, 0)),       # x: replicated
                pl.BlockSpec((C_IN, C_MID), lambda j: (0, 0)),   # w1: replicated
                pl.BlockSpec((2, cols), lambda j: (0, j)),       # packed biases
                pl.BlockSpec((C_MID, cols), lambda j: (0, j)),   # w2: column-sharded
            ],
            out_specs=pl.BlockSpec((M, cols), lambda j: (0, j)),
        ),
        compiler_params=pltpu.CompilerParams(
            dimension_semantics=("parallel",),
        ),
        cost_estimate=pl.CostEstimate(
            flops=flops, transcendentals=0, bytes_accessed=bytes_accessed),
    )(x2d, w1, bias, w2)

    return out2d[:, :C_IN].reshape(N, C_IN, H, W)     # drop pad, back to NCHW


if __name__ == "__main__":
    key = jax.random.PRNGKey(0)
    k_x, k_w1, k_b1, k_w2, k_b2 = jax.random.split(key, 5)

    # Input matching the module: [1, 960, 1, 1]
    x = jax.random.normal(k_x, (1, C_IN, 1, 1), dtype=jnp.float32)

    # Deterministic parameter init (shapes per nn.Conv2d defs)
    w1_conv = jax.random.normal(k_w1, (C_MID, C_IN, 1, 1), dtype=jnp.float32) * 0.02
    b1 = jax.random.normal(k_b1, (C_MID,), dtype=jnp.float32) * 0.02
    w2_conv = jax.random.normal(k_w2, (C_IN, C_MID, 1, 1), dtype=jnp.float32) * 0.02
    b2 = jax.random.normal(k_b2, (C_IN,), dtype=jnp.float32) * 0.02

    # One-time weight prep (model init), then the fused Pallas forward.
    shards = _num_col_shards()                 # 2 on v7x, 1 on v5e / v6e
    w1_p, bias_p, w2_p, cols = prepare_params(w1_conv, b1, w2_conv, b2, shards)
    fwd = jax.jit(functools.partial(conv_relu_conv, cols=cols))
    out = fwd(x, w1_p, bias_p, w2_p)
    out = jax.block_until_ready(out)
    assert out.shape == (1, C_IN, 1, 1)

    # Reference 1: full-f32 math (original module semantics) — loose tolerance
    # absorbs the intentional bf16 weight quantization.
    xv = x.reshape(C_IN)
    h_f32 = jnp.maximum(w1_conv.reshape(C_MID, C_IN) @ xv + b1, 0.0)
    o_f32 = (w2_conv.reshape(C_IN, C_MID) @ h_f32 + b2).reshape(1, C_IN, 1, 1)
    assert jnp.allclose(out, o_f32, atol=3e-2, rtol=3e-2)

    # Reference 2: bf16-weight-matched math (x and h stay f32, like the kernel).
    w1b = w1_conv.reshape(C_MID, C_IN).astype(jnp.bfloat16).astype(jnp.float32)
    w2b = w2_conv.reshape(C_IN, C_MID).astype(jnp.bfloat16).astype(jnp.float32)
    h_b = jnp.maximum(w1b @ xv + b1, 0.0)
    o_b = (w2b @ h_b + b2).reshape(1, C_IN, 1, 1)
    assert jnp.allclose(out, o_b, atol=5e-3, rtol=5e-3)

    print("KERNEL_OK")
</pallas_src>

<mosaic_0001>
module attributes {stable_mosaic.version = 11 : i64} {
  func.func @_mlp_kernel(%arg0: i32, %arg1: memref<1x960xf32, #tpu.memory_space<vmem>>, %arg2: memref<960x240xbf16, #tpu.memory_space<vmem>>, %arg3: memref<2x960xf32, #tpu.memory_space<vmem>>, %arg4: memref<240x960xbf16, #tpu.memory_space<vmem>>, %arg5: memref<1x960xf32, #tpu.memory_space<vmem>>) attributes {dimension_semantics = [#tpu.dimension_semantics<parallel>], iteration_bounds = array<i64: 1>, scalar_prefetch = 0 : i64, scratch_operands = 0 : i64, tpu.core_type = #tpu.core_type<tc>, window_params = [{pipeline_mode = #tpu.pipeline_mode<synchronous>, transform_indices = @transform_0, window_bounds = array<i64: 1, 960>}, {pipeline_mode = #tpu.pipeline_mode<synchronous>, transform_indices = @transform_1, window_bounds = array<i64: 960, 240>}, {transform_indices = @transform_2, window_bounds = array<i64: 2, 960>}, {transform_indices = @transform_3, window_bounds = array<i64: 240, 960>}, {transform_indices = @transform_4, window_bounds = array<i64: 1, 960>}]} {
    %c0 = arith.constant 0 : index
    %c0_0 = arith.constant 0 : index
    %0 = vector.load %arg1[%c0, %c0_0] : memref<1x960xf32, #tpu.memory_space<vmem>>, vector<1x960xf32>
    %c0_1 = arith.constant 0 : index
    %c0_2 = arith.constant 0 : index
    %1 = vector.load %arg2[%c0_1, %c0_2] : memref<960x240xbf16, #tpu.memory_space<vmem>>, vector<960x240xbf16>
    %cst = arith.constant dense<0.000000e+00> : vector<1x240xf32>
    %2 = tpu.matmul %0, %1, %cst {dimension_numbers = #tpu.dot_dimension_numbers<[1], [0], [0], [1], [0, 0, 1, 1], [], []>} : vector<1x960xf32>, vector<960x240xbf16>, vector<1x240xf32> -> vector<1x240xf32>
    %c0_3 = arith.constant 0 : index
    %c0_4 = arith.constant 0 : index
    %3 = vector.load %arg3[%c0_3, %c0_4] : memref<2x960xf32, #tpu.memory_space<vmem>>, vector<1x240xf32>
    %4 = arith.addf %2, %3 : vector<1x240xf32>
    %cst_5 = arith.constant 0.000000e+00 : f32
    %5 = vector.broadcast %cst_5 : f32 to vector<1x240xf32>
    %6 = arith.maximumf %4, %5 : vector<1x240xf32>
    %c0_6 = arith.constant 0 : index
    %c0_7 = arith.constant 0 : index
    %7 = vector.load %arg4[%c0_6, %c0_7] : memref<240x960xbf16, #tpu.memory_space<vmem>>, vector<240x960xbf16>
    %cst_8 = arith.constant dense<0.000000e+00> : vector<1x960xf32>
    %8 = tpu.matmul %6, %7, %cst_8 {dimension_numbers = #tpu.dot_dimension_numbers<[1], [0], [0], [1], [0, 0, 1, 1], [], []>} : vector<1x240xf32>, vector<240x960xbf16>, vector<1x960xf32> -> vector<1x960xf32>
    %c1 = arith.constant 1 : index
    %c0_9 = arith.constant 0 : index
    %9 = vector.load %arg3[%c1, %c0_9] : memref<2x960xf32, #tpu.memory_space<vmem>>, vector<1x960xf32>
    %10 = arith.addf %8, %9 : vector<1x960xf32>
    %c0_10 = arith.constant 0 : index
    %c0_11 = arith.constant 0 : index
    %11 = vector.load %arg5[%c0_10, %c0_11] : memref<1x960xf32, #tpu.memory_space<vmem>>, vector<1x960xf32>
    tpu.vector_store %arg5[%c0_10, %c0_11], %10 {strides = array<i32>} : memref<1x960xf32, #tpu.memory_space<vmem>>, vector<1x960xf32>,
    return
  }
  func.func @transform_0(%arg0: i32) -> (i32, i32) {
    %c0_i32 = arith.constant 0 : i32
    %c0_i32_0 = arith.constant 0 : i32
    %c0_i32_1 = arith.constant 0 : i32
    return %c0_i32, %c0_i32_0 : i32, i32
  }
  func.func @transform_1(%arg0: i32) -> (i32, i32) {
    %c0_i32 = arith.constant 0 : i32
    %c0_i32_0 = arith.constant 0 : i32
    %c0_i32_1 = arith.constant 0 : i32
    return %c0_i32, %c0_i32_0 : i32, i32
  }
  func.func @transform_2(%arg0: i32) -> (i32, i32) {
    %c0_i32 = arith.constant 0 : i32
    %c0_i32_0 = arith.constant 0 : i32
    return %c0_i32, %arg0 : i32, i32
  }
  func.func @transform_3(%arg0: i32) -> (i32, i32) {
    %c0_i32 = arith.constant 0 : i32
    %c0_i32_0 = arith.constant 0 : i32
    return %c0_i32, %arg0 : i32, i32
  }
  func.func @transform_4(%arg0: i32) -> (i32, i32) {
    %c0_i32 = arith.constant 0 : i32
    %c0_i32_0 = arith.constant 0 : i32
    return %c0_i32, %arg0 : i32, i32
  }
}

</mosaic_0001>

<llo_original>
// kernel: conv_relu_conv.1
$region0: #{conv_relu_conv.1}
  #allocation0 [shape = 'u32[]', space=smem, size = 0x4, offset = 0x4, fixed_abs, tag = 'smem constant byte address 0x4 - core index']
  #allocation1 [shape = 'u32[144,128]{1,0:T(1,128)}', space=vmem, size = 0x12000, scoped, tag = 'internal scratch']
  %s0 = inlined_call_operand.hbm [shape: f32[1,960], index: 0, kind: input, shape index: {}]
  %s1 = inlined_call_operand.hbm [shape: bf16[960,240], index: 1, kind: input, shape index: {}]
  %s2 = inlined_call_operand.hbm [shape: f32[2,960], index: 2, kind: input, shape index: {}]
  %s3 = inlined_call_operand.hbm [shape: bf16[240,960], index: 3, kind: input, shape index: {}]
  %s4 = inlined_call_operand.hbm [shape: f32[1,960], index: 4, kind: output, shape index: {}]
  %s5 = sld [smem:[#allocation0]]
  $region42: #{conv_relu_conv.1} parent=0
    _
  %s7 = ssub.s32 1, %s5
  %s8 = scalar_select 0, %s7, %s5
  $region1: #{conv_relu_conv.1} parent=0
    #allocation2 [shape = 'u8[4096]{0}', space=vmem, size = 0x1000, scoped, tag = 'input window, operand 0, single buffered']
    #allocation3 [shape = 's32[1]{0}', space=sflag, size = 0x4, scoped, tag = 'scoped memory for conv_relu_conv.1']
    #allocation4 [shape = 's32[1]{0}', space=sflag, size = 0x4, scoped, tag = 'scoped memory for conv_relu_conv.1']
    #allocation5 [shape = 'u8[491520]{0}', space=vmem, size = 0x78000, scoped, tag = 'input window, operand 1, single buffered']
    #allocation6 [shape = 's32[1]{0}', space=sflag, size = 0x4, scoped, tag = 'scoped memory for conv_relu_conv.1']
    #allocation7 [shape = 'u8[8192]{0}', space=vmem, size = 0x2000, scoped, tag = 'input window, operand 2, single buffered']
    #allocation8 [shape = 'u8[491520]{0}', space=vmem, size = 0x78000, scoped, tag = 'input window, operand 3, single buffered']
    #allocation9 [shape = 's32[1]{0}', space=sflag, size = 0x4, scoped, tag = 'scoped memory for conv_relu_conv.1']
    #allocation10 [shape = 'u8[4096]{0}', space=vmem, size = 0x1000, scoped, tag = 'output window, operand 0, single buffered']
    %9 = vsyncpa [#allocation3], 0
    %10 = vsyncpa [#allocation6], 0
    %11 = vsyncpa [#allocation9], 0
    %12 = vsyncpa [#allocation4], 0
    // Predicated region
    $region2: #{conv_relu_conv.1} parent=1 // pred_check
      _
    $region3: #{conv_relu_conv.1} parent=1 // pred_check_branch
      %14 = sbr.rel (0) target = $region5
    $region4: #{conv_relu_conv.1} parent=1 // pred_region
      %s16 = ssub.s32 128, 128
      %17 = vsyncadd [#allocation3], %s16
      %s19 = sshll.u32 [#allocation2], 4
      %s20 = int_to_ptr.vmem [resolvable:$true] %s19
      %22 = dma.hbm_to_vmem [thread:$0]  %s0, 128, %s20, [#allocation3]
    $region5: #{conv_relu_conv.1} parent=1 // pred_fallthru
      _
    // Predicated region
    $region6: #{conv_relu_conv.1} parent=1 // pred_check
      _
    $region7: #{conv_relu_conv.1} parent=1 // pred_check_branch
      %24 = sbr.rel (0) target = $region9
    $region8: #{conv_relu_conv.1} parent=1 // pred_region
      %s26 = ssub.s32 15360, 15360
      %27 = vsyncadd [#allocation6], %s26
      %s28 = sshll.u32 [#allocation5], 4
      %s29 = int_to_ptr.vmem [resolvable:$true] %s28
      %34 = dma.hbm_to_vmem [thread:$0]  %s1, 15360, %s29, [#allocation6], 128, 128, 8
    $region9: #{conv_relu_conv.1} parent=1 // pred_fallthru
      _
    // Predicated region
    $region10: #{conv_relu_conv.1} parent=1 // pred_check
      _
    $region11: #{conv_relu_conv.1} parent=1 // pred_check_branch
      %36 = sbr.rel (0) target = $region13
    $region12: #{conv_relu_conv.1} parent=1 // pred_region
      %s38 = ssub.s32 256, 256
      %39 = vsyncadd [#allocation6], %s38
      %s41 = sshll.u32 [#allocation7], 4
      %s42 = int_to_ptr.vmem [resolvable:$true] %s41
      %44 = dma.hbm_to_vmem [thread:$0]  %s2, 256, %s42, [#allocation6]
    $region13: #{conv_relu_conv.1} parent=1 // pred_fallthru
      _
    // Predicated region
    $region14: #{conv_relu_conv.1} parent=1 // pred_check
      _
    $region15: #{conv_relu_conv.1} parent=1 // pred_check_branch
      %46 = sbr.rel (0) target = $region17
    $region16: #{conv_relu_conv.1} parent=1 // pred_region
      %s48 = ssub.s32 15360, 15360
      %49 = vsyncadd [#allocation9], %s48
      %s50 = sshll.u32 [#allocation8], 4
      %s51 = int_to_ptr.vmem [resolvable:$true] %s50
      %56 = dma.hbm_to_vmem [thread:$0]  %s3, 15360, %s51, [#allocation9], 512, 512, 32
    $region17: #{conv_relu_conv.1} parent=1 // pred_fallthru
      _
    // Predicated region
    $region18: #{conv_relu_conv.1} parent=1 // pred_check
      _
    $region19: #{conv_relu_conv.1} parent=1 // pred_check_branch
      %58 = sbr.rel (0) target = $region21
    $region20: #{conv_relu_conv.1} parent=1 // pred_region
      %59 = dma.done [#allocation3], 128
    $region21: #{conv_relu_conv.1} parent=1 // pred_fallthru
      _
    // Predicated region
    $region22: #{conv_relu_conv.1} parent=1 // pred_check
      _
    $region23: #{conv_relu_conv.1} parent=1 // pred_check_branch
      %61 = sbr.rel (0) target = $region25
    $region24: #{conv_relu_conv.1} parent=1 // pred_region
      %62 = dma.done [#allocation6], 15360
    $region25: #{conv_relu_conv.1} parent=1 // pred_fallthru
      _
    // Predicated region
    $region26: #{conv_relu_conv.1} parent=1 // pred_check
      _
    $region27: #{conv_relu_conv.1} parent=1 // pred_check_branch
      %64 = sbr.rel (0) target = $region29
    $region28: #{conv_relu_conv.1} parent=1 // pred_region
      %65 = dma.done [#allocation6], 256
    $region29: #{conv_relu_conv.1} parent=1 // pred_fallthru
      _
    // Predicated region
    $region30: #{conv_relu_conv.1} parent=1 // pred_check
      _
    $region31: #{conv_relu_conv.1} parent=1 // pred_check_branch
      %67 = sbr.rel (0) target = $region33
    $region32: #{conv_relu_conv.1} parent=1 // pred_region
      %68 = dma.done [#allocation9], 15360
    $region33: #{conv_relu_conv.1} parent=1 // pred_fallthru
      _
    %v70 = vld [vmem:[#allocation2] sm:$0xff]
    %v71 = vld [vmem:[#allocation5] sm:$0xff]
    %v72 = vld [vmem:[#allocation5 + $0x8] sm:$0xff]
    %v73 = vld [vmem:[#allocation5 + $0x10] sm:$0xff]
    %v74 = vld [vmem:[#allocation5 + $0x18] sm:$0xff]
    %v75 = vld [vmem:[#allocation5 + $0x20] sm:$0xff]
    %v76 = vld [vmem:[#allocation5 + $0x28] sm:$0xff]
    %v77 = vld [vmem:[#allocation5 + $0x30] sm:$0xff]
    %v78 = vld [vmem:[#allocation5 + $0x38] sm:$0xff]
    %v79 = vld [vmem:[#allocation5 + $0x40] sm:$0xff]
    %v80 = vld [vmem:[#allocation5 + $0x48] sm:$0xff]
    %v81 = vld [vmem:[#allocation5 + $0x50] sm:$0xff]
    %v82 = vld [vmem:[#allocation5 + $0x58] sm:$0xff]
    %v83 = vld [vmem:[#allocation5 + $0x60] sm:$0xff]
    %v84 = vld [vmem:[#allocation5 + $0x68] sm:$0xff]
    %v85 = vld [vmem:[#allocation5 + $0x70] sm:$0xff]
    %v86 = vld [vmem:[#allocation5 + $0x78] sm:$0xff]
    %v87 = vld [vmem:[#allocation5 + $0x80] sm:$0xff]
    %v88 = vld [vmem:[#allocation5 + $0x88] sm:$0xff]
    %v89 = vld [vmem:[#allocation5 + $0x90] sm:$0xff]
    %v90 = vld [vmem:[#allocation5 + $0x98] sm:$0xff]
    %v91 = vld [vmem:[#allocation5 + $0xa0] sm:$0xff]
    %v92 = vld [vmem:[#allocation5 + $0xa8] sm:$0xff]
    %v93 = vld [vmem:[#allocation5 + $0xb0] sm:$0xff]
    %v94 = vld [vmem:[#allocation5 + $0xb8] sm:$0xff]
    %v95 = vld [vmem:[#allocation5 + $0xc0] sm:$0xff]
    %v96 = vld [vmem:[#allocation5 + $0xc8] sm:$0xff]
    %v97 = vld [vmem:[#allocation5 + $0xd0] sm:$0xff]
    %v98 = vld [vmem:[#allocation5 + $0xd8] sm:$0xff]
    %v99 = vld [vmem:[#allocation5 + $0xe0] sm:$0xff]
    %v100 = vld [vmem:[#allocation5 + $0xe8] sm:$0xff]
    %v101 = vld [vmem:[#allocation5 + $0xf0] sm:$0xff]
    %v102 = vld [vmem:[#allocation5 + $0xf8] sm:$0xff]
    %v103 = vld [vmem:[#allocation5 + $0x100] sm:$0xff]
    %v104 = vld [vmem:[#allocation5 + $0x108] sm:$0xff]
    %v105 = vld [vmem:[#allocation5 + $0x110] sm:$0xff]
    %v106 = vld [vmem:[#allocation5 + $0x118] sm:$0xff]
    %v107 = vld [vmem:[#allocation5 + $0x120] sm:$0xff]
    %v108 = vld [vmem:[#allocation5 + $0x128] sm:$0xff]
    %v109 = vld [vmem:[#allocation5 + $0x130] sm:$0xff]
    %v110 = vld [vmem:[#allocation5 + $0x138] sm:$0xff]
    %v111 = vld [vmem:[#allocation5 + $0x140] sm:$0xff]
    %v112 = vld [vmem:[#allocation5 + $0x148] sm:$0xff]
    %v113 = vld [vmem:[#allocation5 + $0x150] sm:$0xff]
    %v114 = vld [vmem:[#allocation5 + $0x158] sm:$0xff]
    %v115 = vld [vmem:[#allocation5 + $0x160] sm:$0xff]
    %v116 = vld [vmem:[#allocation5 + $0x168] sm:$0xff]
    %v117 = vld [vmem:[#allocation5 + $0x170] sm:$0xff]
    %v118 = vld [vmem:[#allocation5 + $0x178] sm:$0xff]
    %v119 = vld [vmem:[#allocation5 + $0x180] sm:$0xff]
    %v120 = vld [vmem:[#allocation5 + $0x188] sm:$0xff]
    %v121 = vld [vmem:[#allocation5 + $0x190] sm:$0xff]
    %v122 = vld [vmem:[#allocation5 + $0x198] sm:$0xff]
    %v123 = vld [vmem:[#allocation5 + $0x1a0] sm:$0xff]
    %v124 = vld [vmem:[#allocation5 + $0x1a8] sm:$0xff]
    %v125 = vld [vmem:[#allocation5 + $0x1b0] sm:$0xff]
    %v126 = vld [vmem:[#allocation5 + $0x1b8] sm:$0xff]
    %v127 = vld [vmem:[#allocation5 + $0x1c0] sm:$0xff]
    %v128 = vld [vmem:[#allocation5 + $0x1c8] sm:$0xff]
    %v129 = vld [vmem:[#allocation5 + $0x1d0] sm:$0xff]
    %v130 = vld [vmem:[#allocation5 + $0x1d8] sm:$0xff]
    %v131 = vld [vmem:[#allocation5 + $0x1e0] sm:$0xff]
    %v132 = vld [vmem:[#allocation5 + $0x1e8] sm:$0xff]
    %v133 = vld [vmem:[#allocation5 + $0x1f0] sm:$0xff]
    %v134 = vld [vmem:[#allocation5 + $0x1f8] sm:$0xff]
    %v135 = vld [vmem:[#allocation5 + $0x200] sm:$0xff]
    %v136 = vld [vmem:[#allocation5 + $0x208] sm:$0xff]
    %v137 = vld [vmem:[#allocation5 + $0x210] sm:$0xff]
    %v138 = vld [vmem:[#allocation5 + $0x218] sm:$0xff]
    %v139 = vld [vmem:[#allocation5 + $0x220] sm:$0xff]
    %v140 = vld [vmem:[#allocation5 + $0x228] sm:$0xff]
    %v141 = vld [vmem:[#allocation5 + $0x230] sm:$0xff]
    %v142 = vld [vmem:[#allocation5 + $0x238] sm:$0xff]
    %v143 = vld [vmem:[#allocation5 + $0x240] sm:$0xff]
    %v144 = vld [vmem:[#allocation5 + $0x248] sm:$0xff]
    %v145 = vld [vmem:[#allocation5 + $0x250] sm:$0xff]
    %v146 = vld [vmem:[#allocation5 + $0x258] sm:$0xff]
    %v147 = vld [vmem:[#allocation5 + $0x260] sm:$0xff]
    %v148 = vld [vmem:[#allocation5 + $0x268] sm:$0xff]
    %v149 = vld [vmem:[#allocation5 + $0x270] sm:$0xff]
    %v150 = vld [vmem:[#allocation5 + $0x278] sm:$0xff]
    %v151 = vld [vmem:[#allocation5 + $0x280] sm:$0xff]
    %v152 = vld [vmem:[#allocation5 + $0x288] sm:$0xff]
    %v153 = vld [vmem:[#allocation5 + $0x290] sm:$0xff]
    %v154 = vld [vmem:[#allocation5 + $0x298] sm:$0xff]
    %v155 = vld [vmem:[#allocation5 + $0x2a0] sm:$0xff]
    %v156 = vld [vmem:[#allocation5 + $0x2a8] sm:$0xff]
    %v157 = vld [vmem:[#allocation5 + $0x2b0] sm:$0xff]
    %v158 = vld [vmem:[#allocation5 + $0x2b8] sm:$0xff]
    %v159 = vld [vmem:[#allocation5 + $0x2c0] sm:$0xff]
    %v160 = vld [vmem:[#allocation5 + $0x2c8] sm:$0xff]
    %v161 = vld [vmem:[#allocation5 + $0x2d0] sm:$0xff]
    %v162 = vld [vmem:[#allocation5 + $0x2d8] sm:$0xff]
    %v163 = vld [vmem:[#allocation5 + $0x2e0] sm:$0xff]
    %v164 = vld [vmem:[#allocation5 + $0x2e8] sm:$0xff]
    %v165 = vld [vmem:[#allocation5 + $0x2f0] sm:$0xff]
    %v166 = vld [vmem:[#allocation5 + $0x2f8] sm:$0xff]
    %v167 = vld [vmem:[#allocation5 + $0x300] sm:$0xff]
    %v168 = vld [vmem:[#allocation5 + $0x308] sm:$0xff]
    %v169 = vld [vmem:[#allocation5 + $0x310] sm:$0xff]
    %v170 = vld [vmem:[#allocation5 + $0x318] sm:$0xff]
    %v171 = vld [vmem:[#allocation5 + $0x320] sm:$0xff]
    %v172 = vld [vmem:[#allocation5 + $0x328] sm:$0xff]
    %v173 = vld [vmem:[#allocation5 + $0x330] sm:$0xff]
    %v174 = vld [vmem:[#allocation5 + $0x338] sm:$0xff]
    %v175 = vld [vmem:[#allocation5 + $0x340] sm:$0xff]
    %v176 = vld [vmem:[#allocation5 + $0x348] sm:$0xff]
    %v177 = vld [vmem:[#allocation5 + $0x350] sm:$0xff]
    %v178 = vld [vmem:[#allocation5 + $0x358] sm:$0xff]
    %v179 = vld [vmem:[#allocation5 + $0x360] sm:$0xff]
    %v180 = vld [vmem:[#allocation5 + $0x368] sm:$0xff]
    %v181 = vld [vmem:[#allocation5 + $0x370] sm:$0xff]
    %v182 = vld [vmem:[#allocation5 + $0x378] sm:$0xff]
    %v183 = vld [vmem:[#allocation5 + $0x380] sm:$0xff]
    %v184 = vld [vmem:[#allocation5 + $0x388] sm:$0xff]
    %v185 = vld [vmem:[#allocation5 + $0x390] sm:$0xff]
    %v186 = vld [vmem:[#allocation5 + $0x398] sm:$0xff]
    %v187 = vld [vmem:[#allocation5 + $0x3a0] sm:$0xff]
    %v188 = vld [vmem:[#allocation5 + $0x3a8] sm:$0xff]
    %v189 = vld [vmem:[#allocation5 + $0x3b0] sm:$0xff]
    %v190 = vld [vmem:[#allocation5 + $0x3b8] sm:$0xff]
    %v191 = vld [vmem:[#allocation7] ss:$2 sm:$0x3]
    %v193 = vlaneseq
    %v194 = vshrl.u32 %v193, 7
    %v195 = vsub.s32 0, %v194
    %v196 = vrot.slane %v70, %v195
    %v197 = vlaneseq
    %v198 = vshrl.u32 %v197, 7
    %v199 = vsub.s32 1, %v198
    %v200 = vrot.slane %v70, %v199
    %v201 = vlaneseq
    %v202 = vshrl.u32 %v201, 7
    %v203 = vsub.s32 2, %v202
    %v204 = vrot.slane %v70, %v203
    %v205 = vlaneseq
    %v206 = vshrl.u32 %v205, 7
    %v207 = vsub.s32 3, %v206
    %v208 = vrot.slane %v70, %v207
    %v209 = vlaneseq
    %v210 = vshrl.u32 %v209, 7
    %v211 = vsub.s32 4, %v210
    %v212 = vrot.slane %v70, %v211
    %v213 = vlaneseq
    %v214 = vshrl.u32 %v213, 7
    %v215 = vsub.s32 5, %v214
    %v216 = vrot.slane %v70, %v215
    %v217 = vlaneseq
    %v218 = vshrl.u32 %v217, 7
    %v219 = vsub.s32 6, %v218
    %v220 = vrot.slane %v70, %v219
    %v221 = vlaneseq
    %v222 = vshrl.u32 %v221, 7
    %v223 = vsub.s32 7, %v222
    %v224 = vrot.slane %v70, %v223
    %v352 = vunpack.c.l.b16 %v71
    %v353 = vunpack.c.h.b16 %v71
    %v354 = vunpack.c.l.b16 %v72
    %v355 = vunpack.c.h.b16 %v72
    %v356 = vunpack.c.l.b16 %v73
    %v357 = vunpack.c.h.b16 %v73
    %v358 = vunpack.c.l.b16 %v74
    %v359 = vunpack.c.h.b16 %v74
    %v360 = vunpack.c.l.b16 %v75
    %v361 = vunpack.c.h.b16 %v75
    %v362 = vunpack.c.l.b16 %v76
    %v363 = vunpack.c.h.b16 %v76
    %v364 = vunpack.c.l.b16 %v77
    %v365 = vunpack.c.h.b16 %v77
    %v366 = vunpack.c.l.b16 %v78
    %v367 = vunpack.c.h.b16 %v78
    %v368 = vunpack.c.l.b16 %v79
    %v369 = vunpack.c.h.b16 %v79
    %v370 = vunpack.c.l.b16 %v80
    %v371 = vunpack.c.h.b16 %v80
    %v372 = vunpack.c.l.b16 %v81
    %v373 = vunpack.c.h.b16 %v81
    %v374 = vunpack.c.l.b16 %v82
    %v375 = vunpack.c.h.b16 %v82
    %v376 = vunpack.c.l.b16 %v83
    %v377 = vunpack.c.h.b16 %v83
    %v378 = vunpack.c.l.b16 %v84
    %v379 = vunpack.c.h.b16 %v84
    %v380 = vunpack.c.l.b16 %v85
    %v381 = vunpack.c.h.b16 %v85
    %v382 = vunpack.c.l.b16 %v86
    %v383 = vunpack.c.h.b16 %v86
    %v384 = vunpack.c.l.b16 %v87
    %v385 = vunpack.c.h.b16 %v87
    %v386 = vunpack.c.l.b16 %v88
    %v387 = vunpack.c.h.b16 %v88
    %v388 = vunpack.c.l.b16 %v89
    %v389 = vunpack.c.h.b16 %v89
    %v390 = vunpack.c.l.b16 %v90
    %v391 = vunpack.c.h.b16 %v90
    %v392 = vunpack.c.l.b16 %v91
    %v393 = vunpack.c.h.b16 %v91
    %v394 = vunpack.c.l.b16 %v92
    %v395 = vunpack.c.h.b16 %v92
    %v396 = vunpack.c.l.b16 %v93
    %v397 = vunpack.c.h.b16 %v93
    %v398 = vunpack.c.l.b16 %v94
    %v399 = vunpack.c.h.b16 %v94
    %v400 = vunpack.c.l.b16 %v95
    %v401 = vunpack.c.h.b16 %v95
    %v402 = vunpack.c.l.b16 %v96
    %v403 = vunpack.c.h.b16 %v96
    %v404 = vunpack.c.l.b16 %v97
    %v405 = vunpack.c.h.b16 %v97
    %v406 = vunpack.c.l.b16 %v98
    %v407 = vunpack.c.h.b16 %v98
    %v408 = vunpack.c.l.b16 %v99
    %v409 = vunpack.c.h.b16 %v99
    %v410 = vunpack.c.l.b16 %v100
    %v411 = vunpack.c.h.b16 %v100
    %v412 = vunpack.c.l.b16 %v101
    %v413 = vunpack.c.h.b16 %v101
    %v414 = vunpack.c.l.b16 %v102
    %v415 = vunpack.c.h.b16 %v102
    %v416 = vunpack.c.l.b16 %v103
    %v417 = vunpack.c.h.b16 %v103
    %v418 = vunpack.c.l.b16 %v104
    %v419 = vunpack.c.h.b16 %v104
    %v420 = vunpack.c.l.b16 %v105
    %v421 = vunpack.c.h.b16 %v105
    %v422 = vunpack.c.l.b16 %v106
    %v423 = vunpack.c.h.b16 %v106
    %v424 = vunpack.c.l.b16 %v107
    %v425 = vunpack.c.h.b16 %v107
    %v426 = vunpack.c.l.b16 %v108
    %v427 = vunpack.c.h.b16 %v108
    %v428 = vunpack.c.l.b16 %v109
    %v429 = vunpack.c.h.b16 %v109
    %v430 = vunpack.c.l.b16 %v110
    %v431 = vunpack.c.h.b16 %v110
    %v432 = vunpack.c.l.b16 %v111
    %v433 = vunpack.c.h.b16 %v111
    %v434 = vunpack.c.l.b16 %v112
    %v435 = vunpack.c.h.b16 %v112
    %v436 = vunpack.c.l.b16 %v113
    %v437 = vunpack.c.h.b16 %v113
    %v438 = vunpack.c.l.b16 %v114
    %v439 = vunpack.c.h.b16 %v114
    %v440 = vunpack.c.l.b16 %v115
    %v441 = vunpack.c.h.b16 %v115
    %v442 = vunpack.c.l.b16 %v116
    %v443 = vunpack.c.h.b16 %v116
    %v444 = vunpack.c.l.b16 %v117
    %v445 = vunpack.c.h.b16 %v117
    %v446 = vunpack.c.l.b16 %v118
    %v447 = vunpack.c.h.b16 %v118
    %v448 = vunpack.c.l.b16 %v119
    %v449 = vunpack.c.h.b16 %v119
    %v450 = vunpack.c.l.b16 %v120
    %v451 = vunpack.c.h.b16 %v120
    %v452 = vunpack.c.l.b16 %v121
    %v453 = vunpack.c.h.b16 %v121
    %v454 = vunpack.c.l.b16 %v122
    %v455 = vunpack.c.h.b16 %v122
    %v456 = vunpack.c.l.b16 %v123
    %v457 = vunpack.c.h.b16 %v123
    %v458 = vunpack.c.l.b16 %v124
    %v459 = vunpack.c.h.b16 %v124
    %v460 = vunpack.c.l.b16 %v125
    %v461 = vunpack.c.h.b16 %v125
    %v462 = vunpack.c.l.b16 %v126
    %v463 = vunpack.c.h.b16 %v126
    %v464 = vunpack.c.l.b16 %v127
    %v465 = vunpack.c.h.b16 %v127
    %v466 = vunpack.c.l.b16 %v128
    %v467 = vunpack.c.h.b16 %v128
    %v468 = vunpack.c.l.b16 %v129
    %v469 = vunpack.c.h.b16 %v129
    %v470 = vunpack.c.l.b16 %v130
    %v471 = vunpack.c.h.b16 %v130
    %v472 = vunpack.c.l.b16 %v131
    %v473 = vunpack.c.h.b16 %v131
    %v474 = vunpack.c.l.b16 %v132
    %v475 = vunpack.c.h.b16 %v132
    %v476 = vunpack.c.l.b16 %v133
    %v477 = vunpack.c.h.b16 %v133
    %v478 = vunpack.c.l.b16 %v134
    %v479 = vunpack.c.h.b16 %v134
    %v480 = vunpack.c.l.b16 %v135
    %v481 = vunpack.c.h.b16 %v135
    %v482 = vunpack.c.l.b16 %v136
    %v483 = vunpack.c.h.b16 %v136
    %v484 = vunpack.c.l.b16 %v137
    %v485 = vunpack.c.h.b16 %v137
    %v486 = vunpack.c.l.b16 %v138
    %v487 = vunpack.c.h.b16 %v138
    %v488 = vunpack.c.l.b16 %v139
    %v489 = vunpack.c.h.b16 %v139
    %v490 = vunpack.c.l.b16 %v140
    %v491 = vunpack.c.h.b16 %v140
    %v492 = vunpack.c.l.b16 %v141
    %v493 = vunpack.c.h.b16 %v141
    %v494 = vunpack.c.l.b16 %v142
    %v495 = vunpack.c.h.b16 %v142
    %v496 = vunpack.c.l.b16 %v143
    %v497 = vunpack.c.h.b16 %v143
    %v498 = vunpack.c.l.b16 %v144
    %v499 = vunpack.c.h.b16 %v144
    %v500 = vunpack.c.l.b16 %v145
    %v501 = vunpack.c.h.b16 %v145
    %v502 = vunpack.c.l.b16 %v146
    %v503 = vunpack.c.h.b16 %v146
    %v504 = vunpack.c.l.b16 %v147
    %v505 = vunpack.c.h.b16 %v147
    %v506 = vunpack.c.l.b16 %v148
    %v507 = vunpack.c.h.b16 %v148
    %v508 = vunpack.c.l.b16 %v149
    %v509 = vunpack.c.h.b16 %v149
    %v510 = vunpack.c.l.b16 %v150
    %v511 = vunpack.c.h.b16 %v150
    %v512 = vunpack.c.l.b16 %v151
    %v513 = vunpack.c.h.b16 %v151
    %v514 = vunpack.c.l.b16 %v152
    %v515 = vunpack.c.h.b16 %v152
    %v516 = vunpack.c.l.b16 %v153
    %v517 = vunpack.c.h.b16 %v153
    %v518 = vunpack.c.l.b16 %v154
    %v519 = vunpack.c.h.b16 %v154
    %v520 = vunpack.c.l.b16 %v155
    %v521 = vunpack.c.h.b16 %v155
    %v522 = vunpack.c.l.b16 %v156
    %v523 = vunpack.c.h.b16 %v156
    %v524 = vunpack.c.l.b16 %v157
    %v525 = vunpack.c.h.b16 %v157
    %v526 = vunpack.c.l.b16 %v158
    %v527 = vunpack.c.h.b16 %v158
    %v528 = vunpack.c.l.b16 %v159
    %v529 = vunpack.c.h.b16 %v159
    %v530 = vunpack.c.l.b16 %v160
    %v531 = vunpack.c.h.b16 %v160
    %v532 = vunpack.c.l.b16 %v161
    %v533 = vunpack.c.h.b16 %v161
    %v534 = vunpack.c.l.b16 %v162
    %v535 = vunpack.c.h.b16 %v162
    %v536 = vunpack.c.l.b16 %v163
    %v537 = vunpack.c.h.b16 %v163
    %v538 = vunpack.c.l.b16 %v164
    %v539 = vunpack.c.h.b16 %v164
    %v540 = vunpack.c.l.b16 %v165
    %v541 = vunpack.c.h.b16 %v165
    %v542 = vunpack.c.l.b16 %v166
    %v543 = vunpack.c.h.b16 %v166
    %v544 = vunpack.c.l.b16 %v167
    %v545 = vunpack.c.h.b16 %v167
    %v546 = vunpack.c.l.b16 %v168
    %v547 = vunpack.c.h.b16 %v168
    %v548 = vunpack.c.l.b16 %v169
    %v549 = vunpack.c.h.b16 %v169
    %v550 = vunpack.c.l.b16 %v170
    %v551 = vunpack.c.h.b16 %v170
    %v552 = vunpack.c.l.b16 %v171
    %v553 = vunpack.c.h.b16 %v171
    %v554 = vunpack.c.l.b16 %v172
    %v555 = vunpack.c.h.b16 %v172
    %v556 = vunpack.c.l.b16 %v173
    %v557 = vunpack.c.h.b16 %v173
    %v558 = vunpack.c.l.b16 %v174
    %v559 = vunpack.c.h.b16 %v174
    %v560 = vunpack.c.l.b16 %v175
    %v561 = vunpack.c.h.b16 %v175
    %v562 = vunpack.c.l.b16 %v176
    %v563 = vunpack.c.h.b16 %v176
    %v564 = vunpack.c.l.b16 %v177
    %v565 = vunpack.c.h.b16 %v177
    %v566 = vunpack.c.l.b16 %v178
    %v567 = vunpack.c.h.b16 %v178
    %v568 = vunpack.c.l.b16 %v179
    %v569 = vunpack.c.h.b16 %v179
    %v570 = vunpack.c.l.b16 %v180
    %v571 = vunpack.c.h.b16 %v180
    %v572 = vunpack.c.l.b16 %v181
    %v573 = vunpack.c.h.b16 %v181
    %v574 = vunpack.c.l.b16 %v182
    %v575 = vunpack.c.h.b16 %v182
    %v576 = vunpack.c.l.b16 %v183
    %v577 = vunpack.c.h.b16 %v183
    %v578 = vunpack.c.l.b16 %v184
    %v579 = vunpack.c.h.b16 %v184
    %v580 = vunpack.c.l.b16 %v185
    %v581 = vunpack.c.h.b16 %v185
    %v582 = vunpack.c.l.b16 %v186
    %v583 = vunpack.c.h.b16 %v186
    %v584 = vunpack.c.l.b16 %v187
    %v585 = vunpack.c.h.b16 %v187
    %v586 = vunpack.c.l.b16 %v188
    %v587 = vunpack.c.h.b16 %v188
    %v588 = vunpack.c.l.b16 %v189
    %v589 = vunpack.c.h.b16 %v189
    %v590 = vunpack.c.l.b16 %v190
    %v591 = vunpack.c.h.b16 %v190
    %v592 = vpack.c.b16 %v354, %v352
    %v593 = vpack.c.b16 %v355, %v353
    %v594 = vpack.c.b16 %v358, %v356
    %v595 = vpack.c.b16 %v359, %v357
    %v596 = vpack.c.b16 %v362, %v360
    %v597 = vpack.c.b16 %v363, %v361
    %v598 = vpack.c.b16 %v366, %v364
    %v599 = vpack.c.b16 %v367, %v365
    %v600 = vpack.c.b16 %v370, %v368
    %v601 = vpack.c.b16 %v371, %v369
    %v602 = vpack.c.b16 %v374, %v372
    %v603 = vpack.c.b16 %v375, %v373
    %v604 = vpack.c.b16 %v378, %v376
    %v605 = vpack.c.b16 %v379, %v377
    %v606 = vpack.c.b16 %v382, %v380
    %v607 = vpack.c.b16 %v383, %v381
    %v608 = vpack.c.b16 %v386, %v384
    %v609 = vpack.c.b16 %v387, %v385
    %v610 = vpack.c.b16 %v390, %v388
    %v611 = vpack.c.b16 %v391, %v389
    %v612 = vpack.c.b16 %v394, %v392
    %v613 = vpack.c.b16 %v395, %v393
    %v614 = vpack.c.b16 %v398, %v396
    %v615 = vpack.c.b16 %v399, %v397
    %v616 = vpack.c.b16 %v402, %v400
    %v617 = vpack.c.b16 %v403, %v401
    %v618 = vpack.c.b16 %v406, %v404
    %v619 = vpack.c.b16 %v407, %v405
    %v620 = vpack.c.b16 %v410, %v408
    %v621 = vpack.c.b16 %v411, %v409
    %v622 = vpack.c.b16 %v414, %v412
    %v623 = vpack.c.b16 %v415, %v413
    %v624 = vpack.c.b16 %v418, %v416
    %v625 = vpack.c.b16 %v419, %v417
    %v626 = vpack.c.b16 %v422, %v420
    %v627 = vpack.c.b16 %v423, %v421
    %v628 = vpack.c.b16 %v426, %v424
    %v629 = vpack.c.b16 %v427, %v425
    %v630 = vpack.c.b16 %v430, %v428
    %v631 = vpack.c.b16 %v431, %v429
    %v632 = vpack.c.b16 %v434, %v432
    %v633 = vpack.c.b16 %v435, %v433
    %v634 = vpack.c.b16 %v438, %v436
    %v635 = vpack.c.b16 %v439, %v437
    %v636 = vpack.c.b16 %v442, %v440
    %v637 = vpack.c.b16 %v443, %v441
    %v638 = vpack.c.b16 %v446, %v444
    %v639 = vpack.c.b16 %v447, %v445
    %v640 = vpack.c.b16 %v450, %v448
    %v641 = vpack.c.b16 %v451, %v449
    %v642 = vpack.c.b16 %v454, %v452
    %v643 = vpack.c.b16 %v455, %v453
    %v644 = vpack.c.b16 %v458, %v456
    %v645 = vpack.c.b16 %v459, %v457
    %v646 = vpack.c.b16 %v462, %v460
    %v647 = vpack.c.b16 %v463, %v461
    %v648 = vpack.c.b16 %v466, %v464
    %v649 = vpack.c.b16 %v467, %v465
    %v650 = vpack.c.b16 %v470, %v468
    %v651 = vpack.c.b16 %v471, %v469
    %v652 = vpack.c.b16 %v474, %v472
    %v653 = vpack.c.b16 %v475, %v473
    %v654 = vpack.c.b16 %v478, %v476
    %v655 = vpack.c.b16 %v479, %v477
    %v656 = vpack.c.b16 %v482, %v480
    %v657 = vpack.c.b16 %v483, %v481
    %v658 = vpack.c.b16 %v486, %v484
    %v659 = vpack.c.b16 %v487, %v485
    %v660 = vpack.c.b16 %v490, %v488
    %v661 = vpack.c.b16 %v491, %v489
    %v662 = vpack.c.b16 %v494, %v492
    %v663 = vpack.c.b16 %v495, %v493
    %v664 = vpack.c.b16 %v498, %v496
    %v665 = vpack.c.b16 %v499, %v497
    %v666 = vpack.c.b16 %v502, %v500
    %v667 = vpack.c.b16 %v503, %v501
    %v668 = vpack.c.b16 %v506, %v504
    %v669 = vpack.c.b16 %v507, %v505
    %v670 = vpack.c.b16 %v510, %v508
    %v671 = vpack.c.b16 %v511, %v509
    %v672 = vpack.c.b16 %v514, %v512
    %v673 = vpack.c.b16 %v515, %v513
    %v674 = vpack.c.b16 %v518, %v516
    %v675 = vpack.c.b16 %v519, %v517
    %v676 = vpack.c.b16 %v522, %v520
    %v677 = vpack.c.b16 %v523, %v521
    %v678 = vpack.c.b16 %v526, %v524
    %v679 = vpack.c.b16 %v527, %v525
    %v680 = vpack.c.b16 %v530, %v528
    %v681 = vpack.c.b16 %v531, %v529
    %v682 = vpack.c.b16 %v534, %v532
    %v683 = vpack.c.b16 %v535, %v533
    %v684 = vpack.c.b16 %v538, %v536
    %v685 = vpack.c.b16 %v539, %v537
    %v686 = vpack.c.b16 %v542, %v540
    %v687 = vpack.c.b16 %v543, %v541
    %v688 = vpack.c.b16 %v546, %v544
    %v689 = vpack.c.b16 %v547, %v545
    %v690 = vpack.c.b16 %v550, %v548
    %v691 = vpack.c.b16 %v551, %v549
    %v692 = vpack.c.b16 %v554, %v552
    %v693 = vpack.c.b16 %v555, %v553
    %v694 = vpack.c.b16 %v558, %v556
    %v695 = vpack.c.b16 %v559, %v557
    %v696 = vpack.c.b16 %v562, %v560
    %v697 = vpack.c.b16 %v563, %v561
    %v698 = vpack.c.b16 %v566, %v564
    %v699 = vpack.c.b16 %v567, %v565
    %v700 = vpack.c.b16 %v570, %v568
    %v701 = vpack.c.b16 %v571, %v569
    %v702 = vpack.c.b16 %v574, %v572
    %v703 = vpack.c.b16 %v575, %v573
    %v704 = vpack.c.b16 %v578, %v576
    %v705 = vpack.c.b16 %v579, %v577
    %v706 = vpack.c.b16 %v582, %v580
    %v707 = vpack.c.b16 %v583, %v581
    %v708 = vpack.c.b16 %v586, %v584
    %v709 = vpack.c.b16 %v587, %v585
    %v710 = vpack.c.b16 %v590, %v588
    %v711 = vpack.c.b16 %v591, %v589
    %v833 = vlaneseq
    %v834 = vshrl.u32 %v833, 7
    %v835 = vsub.s32 0, %v834
    %v836 = vrot.slane %v191, %v835
    %v837 = vlaneseq
    %v838 = vshrl.u32 %v837, 7
    %v839 = vsub.s32 1, %v838
    %v840 = vrot.slane %v191, %v839
    %vm843 = vcmask 523264
    %v844 = vsel %vm843, %v224, 0
    %846 = vmatprep.subr.bf16.mxu0 %v593
    %847 = vmatpush1.bf16.msra.mxu0 %v592
    %848 = vmatprep.subr.bf16.mxu0 %v595
    %849 = vmatpush1.bf16.msra.mxu0 %v594
    %850 = vmatprep.subr.bf16.mxu0 %v597
    %851 = vmatpush1.bf16.msra.mxu0 %v596
    %852 = vmatprep.subr.bf16.mxu0 %v599
    %853 = vmatpush1.bf16.msra.mxu0 %v598
    %854 = vmatprep.subr.bf16.mxu0 %v601
    %855 = vmatpush1.bf16.msra.mxu0 %v600
    %856 = vmatprep.subr.bf16.mxu0 %v603
    %857 = vmatpush1.bf16.msra.mxu0 %v602
    %858 = vmatprep.subr.bf16.mxu0 %v605
    %859 = vmatpush1.bf16.msra.mxu0 %v604
    %860 = vmatprep.subr.bf16.mxu0 %v607
    %861 = vmatpush1.bf16.msra.mxu0 %v606
    %862 = vmatprep.subr.bf16.mxu0 %v609
    %863 = vmatpush1.bf16.msra.mxu0 %v608
    %864 = vmatprep.subr.bf16.mxu0 %v611
    %865 = vmatpush1.bf16.msra.mxu0 %v610
    %866 = vmatprep.subr.bf16.mxu0 %v613
    %867 = vmatpush1.bf16.msra.mxu0 %v612
    %868 = vmatprep.subr.bf16.mxu0 %v615
    %869 = vmatpush1.bf16.msra.mxu0 %v614
    %870 = vmatprep.subr.bf16.mxu0 %v617
    %871 = vmatpush1.bf16.msra.mxu0 %v616
    %872 = vmatprep.subr.bf16.mxu0 %v619
    %873 = vmatpush1.bf16.msra.mxu0 %v618
    %874 = vmatprep.subr.bf16.mxu0 %v621
    %875 = vmatpush1.bf16.msra.mxu0 %v620
    %876 = vmatprep.subr.bf16.mxu0 %v623
    %877 = vmatpush1.bf16.msra.mxu0 %v622
    %878 = vmatprep.mubr.f32.mxu0 %v200
    %879 = vmatmul.mubr.f32.gmra.mrb[0].mxu0 %v196
    %v880 = vpop.f32.mrb[0].mxu0
    %v881 = vadd.f32 %v836, %v880
    %v882 = vpop.f32.mrb[0].mxu0
    %v883 = vadd.f32 %v840, %v882
    %884 = vdwg.mxu0
    %885 = vmatprep.subr.bf16.mxu0 %v625
    %886 = vmatpush1.bf16.msra.mxu0 %v624
    %887 = vmatprep.subr.bf16.mxu0 %v627
    %888 = vmatpush1.bf16.msra.mxu0 %v626
    %889 = vmatprep.subr.bf16.mxu0 %v629
    %890 = vmatpush1.bf16.msra.mxu0 %v628
    %891 = vmatprep.subr.bf16.mxu0 %v631
    %892 = vmatpush1.bf16.msra.mxu0 %v630
    %893 = vmatprep.subr.bf16.mxu0 %v633
    %894 = vmatpush1.bf16.msra.mxu0 %v632
    %895 = vmatprep.subr.bf16.mxu0 %v635
    %896 = vmatpush1.bf16.msra.mxu0 %v634
    %897 = vmatprep.subr.bf16.mxu0 %v637
    %898 = vmatpush1.bf16.msra.mxu0 %v636
    %899 = vmatprep.subr.bf16.mxu0 %v639
    %900 = vmatpush1.bf16.msra.mxu0 %v638
    %901 = vmatprep.subr.bf16.mxu0 %v641
    %902 = vmatpush1.bf16.msra.mxu0 %v640
    %903 = vmatprep.subr.bf16.mxu0 %v643
    %904 = vmatpush1.bf16.msra.mxu0 %v642
    %905 = vmatprep.subr.bf16.mxu0 %v645
    %906 = vmatpush1.bf16.msra.mxu0 %v644
    %907 = vmatprep.subr.bf16.mxu0 %v647
    %908 = vmatpush1.bf16.msra.mxu0 %v646
    %909 = vmatprep.subr.bf16.mxu0 %v649
    %910 = vmatpush1.bf16.msra.mxu0 %v648
    %911 = vmatprep.subr.bf16.mxu0 %v651
    %912 = vmatpush1.bf16.msra.mxu0 %v650
    %913 = vmatprep.subr.bf16.mxu0 %v653
    %914 = vmatpush1.bf16.msra.mxu0 %v652
    %915 = vmatprep.subr.bf16.mxu0 %v655
    %916 = vmatpush1.bf16.msra.mxu0 %v654
    %917 = vmatprep.mubr.f32.mxu0 %v208
    %918 = vmatmul.mubr.f32.gmra.mrb[0].mxu0 %v204
    %v919 = vpop.f32.mrb[0].mxu0
    %v920 = vadd.f32 %v881, %v919
    %v921 = vpop.f32.mrb[0].mxu0
    %v922 = vadd.f32 %v883, %v921
    %923 = vdwg.mxu0
    %924 = vmatprep.subr.bf16.mxu0 %v657
    %925 = vmatpush1.bf16.msra.mxu0 %v656
    %926 = vmatprep.subr.bf16.mxu0 %v659
    %927 = vmatpush1.bf16.msra.mxu0 %v658
    %928 = vmatprep.subr.bf16.mxu0 %v661
    %929 = vmatpush1.bf16.msra.mxu0 %v660
    %930 = vmatprep.subr.bf16.mxu0 %v663
    %931 = vmatpush1.bf16.msra.mxu0 %v662
    %932 = vmatprep.subr.bf16.mxu0 %v665
    %933 = vmatpush1.bf16.msra.mxu0 %v664
    %934 = vmatprep.subr.bf16.mxu0 %v667
    %935 = vmatpush1.bf16.msra.mxu0 %v666
    %936 = vmatprep.subr.bf16.mxu0 %v669
    %937 = vmatpush1.bf16.msra.mxu0 %v668
    %938 = vmatprep.subr.bf16.mxu0 %v671
    %939 = vmatpush1.bf16.msra.mxu0 %v670
    %940 = vmatprep.subr.bf16.mxu0 %v673
    %941 = vmatpush1.bf16.msra.mxu0 %v672
    %942 = vmatprep.subr.bf16.mxu0 %v675
    %943 = vmatpush1.bf16.msra.mxu0 %v674
    %944 = vmatprep.subr.bf16.mxu0 %v677
    %945 = vmatpush1.bf16.msra.mxu0 %v676
    %946 = vmatprep.subr.bf16.mxu0 %v679
    %947 = vmatpush1.bf16.msra.mxu0 %v678
    %948 = vmatprep.subr.bf16.mxu0 %v681
    %949 = vmatpush1.bf16.msra.mxu0 %v680
    %950 = vmatprep.subr.bf16.mxu0 %v683
    %951 = vmatpush1.bf16.msra.mxu0 %v682
    %952 = vmatprep.subr.bf16.mxu0 %v685
    %953 = vmatpush1.bf16.msra.mxu0 %v684
    %954 = vmatprep.subr.bf16.mxu0 %v687
    %955 = vmatpush1.bf16.msra.mxu0 %v686
    %956 = vmatprep.mubr.f32.mxu0 %v216
    %957 = vmatmul.mubr.f32.gmra.mrb[0].mxu0 %v212
    %v958 = vpop.f32.mrb[0].mxu0
    %v959 = vadd.f32 %v920, %v958
    %v960 = vpop.f32.mrb[0].mxu0
    %v961 = vadd.f32 %v922, %v960
    %962 = vdwg.mxu0
    %963 = vmatprep.subr.bf16.mxu0 %v689
    %964 = vmatpush1.bf16.msra.mxu0 %v688
    %965 = vmatprep.subr.bf16.mxu0 %v691
    %966 = vmatpush1.bf16.msra.mxu0 %v690
    %967 = vmatprep.subr.bf16.mxu0 %v693
    %968 = vmatpush1.bf16.msra.mxu0 %v692
    %969 = vmatprep.subr.bf16.mxu0 %v695
    %970 = vmatpush1.bf16.msra.mxu0 %v694
    %971 = vmatprep.subr.bf16.mxu0 %v697
    %972 = vmatpush1.bf16.msra.mxu0 %v696
    %973 = vmatprep.subr.bf16.mxu0 %v699
    %974 = vmatpush1.bf16.msra.mxu0 %v698
    %975 = vmatprep.subr.bf16.mxu0 %v701
    %976 = vmatpush1.bf16.msra.mxu0 %v700
    %977 = vmatprep.subr.bf16.mxu0 %v703
    %978 = vmatpush1.bf16.msra.mxu0 %v702
    %979 = vmatprep.subr.bf16.mxu0 %v705
    %980 = vmatpush1.bf16.msra.mxu0 %v704
    %981 = vmatprep.subr.bf16.mxu0 %v707
    %982 = vmatpush1.bf16.msra.mxu0 %v706
    %983 = vmatprep.subr.bf16.mxu0 %v709
    %984 = vmatpush1.bf16.msra.mxu0 %v708
    %985 = vmatprep.subr.bf16.mxu0 %v711
    %986 = vmatpush1.bf16.msra.mxu0 %v710
    %987 = vmatprep.subr.bf16.mxu0 0
    %988 = vmatpush1.bf16.msra.mxu0 0
    %989 = vmatprep.subr.bf16.mxu0 0
    %990 = vmatpush1.bf16.msra.mxu0 0
    %991 = vmatprep.subr.bf16.mxu0 0
    %992 = vmatpush1.bf16.msra.mxu0 0
    %993 = vmatprep.subr.bf16.mxu0 0
    %994 = vmatpush1.bf16.msra.mxu0 0
    %995 = vmatprep.mubr.f32.mxu0 %v844
    %996 = vmatmul.mubr.f32.gmra.mrb[0].mxu0 %v220
    %v997 = vpop.f32.mrb[0].mxu0
    %v998 = vadd.f32 %v959, %v997
    %v999 = vpop.f32.mrb[0].mxu0
    %v1000 = vadd.f32 %v961, %v999
    %1001 = vdwg.mxu0
    %v1002 = vmax.f32 %v998, 0.0
    %v1003 = vmax.f32 %v1000, 0.0
    %v1004 = vld [vmem:[#allocation8] sm:$0xff]
    %v1005 = vld [vmem:[#allocation8 + $0x8] sm:$0xff]
    %v1006 = vld [vmem:[#allocation8 + $0x10] sm:$0xff]
    %v1007 = vld [vmem:[#allocation8 + $0x18] sm:$0xff]
    %v1008 = vld [vmem:[#allocation8 + $0x20] sm:$0xff]
    %v1009 = vld [vmem:[#allocation8 + $0x28] sm:$0xff]
    %v1010 = vld [vmem:[#allocation8 + $0x30] sm:$0xff]
    %v1011 = vld [vmem:[#allocation8 + $0x38] sm:$0xff]
    %v1012 = vld [vmem:[#allocation8 + $0x40] sm:$0xff]
    %v1013 = vld [vmem:[#allocation8 + $0x48] sm:$0xff]
    %v1014 = vld [vmem:[#allocation8 + $0x50] sm:$0xff]
    %v1015 = vld [vmem:[#allocation8 + $0x58] sm:$0xff]
    %v1016 = vld [vmem:[#allocation8 + $0x60] sm:$0xff]
    %v1017 = vld [vmem:[#allocation8 + $0x68] sm:$0xff]
    %v1018 = vld [vmem:[#allocation8 + $0x70] sm:$0xff]
    %v1019 = vld [vmem:[#allocation8 + $0x78] sm:$0xff]
    %v1020 = vld [vmem:[#allocation8 + $0x80] sm:$0xff]
    %v1021 = vld [vmem:[#allocation8 + $0x88] sm:$0xff]
    %v1022 = vld [vmem:[#allocation8 + $0x90] sm:$0xff]
    %v1023 = vld [vmem:[#allocation8 + $0x98] sm:$0xff]
    %v1024 = vld [vmem:[#allocation8 + $0xa0] sm:$0xff]
    %v1025 = vld [vmem:[#allocation8 + $0xa8] sm:$0xff]
    %v1026 = vld [vmem:[#allocation8 + $0xb0] sm:$0xff]
    %v1027 = vld [vmem:[#allocation8 + $0xb8] sm:$0xff]
    %v1028 = vld [vmem:[#allocation8 + $0xc0] sm:$0xff]
    %v1029 = vld [vmem:[#allocation8 + $0xc8] sm:$0xff]
    %v1030 = vld [vmem:[#allocation8 + $0xd0] sm:$0xff]
    %v1031 = vld [vmem:[#allocation8 + $0xd8] sm:$0xff]
    %v1032 = vld [vmem:[#allocation8 + $0xe0] sm:$0xff]
    %v1033 = vld [vmem:[#allocation8 + $0xe8] sm:$0xff]
    %v1034 = vld [vmem:[#allocation8 + $0xf0] sm:$0xff]
    %v1035 = vld [vmem:[#allocation8 + $0xf8] sm:$0xff]
    %v1036 = vld [vmem:[#allocation8 + $0x100] sm:$0xff]
    %v1037 = vld [vmem:[#allocation8 + $0x108] sm:$0xff]
    %v1038 = vld [vmem:[#allocation8 + $0x110] sm:$0xff]
    %v1039 = vld [vmem:[#allocation8 + $0x118] sm:$0xff]
    %v1040 = vld [vmem:[#allocation8 + $0x120] sm:$0xff]
    %v1041 = vld [vmem:[#allocation8 + $0x128] sm:$0xff]
    %v1042 = vld [vmem:[#allocation8 + $0x130] sm:$0xff]
    %v1043 = vld [vmem:[#allocation8 + $0x138] sm:$0xff]
    %v1044 = vld [vmem:[#allocation8 + $0x140] sm:$0xff]
    %v1045 = vld [vmem:[#allocation8 + $0x148] sm:$0xff]
    %v1046 = vld [vmem:[#allocation8 + $0x150] sm:$0xff]
    %v1047 = vld [vmem:[#allocation8 + $0x158] sm:$0xff]
    %v1048 = vld [vmem:[#allocation8 + $0x160] sm:$0xff]
    %v1049 = vld [vmem:[#allocation8 + $0x168] sm:$0xff]
    %v1050 = vld [vmem:[#allocation8 + $0x170] sm:$0xff]
    %v1051 = vld [vmem:[#allocation8 + $0x178] sm:$0xff]
    %v1052 = vld [vmem:[#allocation8 + $0x180] sm:$0xff]
    %v1053 = vld [vmem:[#allocation8 + $0x188] sm:$0xff]
    %v1054 = vld [vmem:[#allocation8 + $0x190] sm:$0xff]
    %v1055 = vld [vmem:[#allocation8 + $0x198] sm:$0xff]
    %v1056 = vld [vmem:[#allocation8 + $0x1a0] sm:$0xff]
    %v1057 = vld [vmem:[#allocation8 + $0x1a8] sm:$0xff]
    %v1058 = vld [vmem:[#allocation8 + $0x1b0] sm:$0xff]
    %v1059 = vld [vmem:[#allocation8 + $0x1b8] sm:$0xff]
    %v1060 = vld [vmem:[#allocation8 + $0x1c0] sm:$0xff]
    %v1061 = vld [vmem:[#allocation8 + $0x1c8] sm:$0xff]
    %v1062 = vld [vmem:[#allocation8 + $0x1d0] sm:$0xff]
    %v1063 = vld [vmem:[#allocation8 + $0x1d8] sm:$0xff]
    %v1064 = vld [vmem:[#allocation8 + $0x1e0] sm:$0xff]
    %v1065 = vld [vmem:[#allocation8 + $0x1e8] sm:$0xff]
    %v1066 = vld [vmem:[#allocation8 + $0x1f0] sm:$0xff]
    %v1067 = vld [vmem:[#allocation8 + $0x1f8] sm:$0xff]
    %v1068 = vld [vmem:[#allocation8 + $0x200] sm:$0xff]
    %v1069 = vld [vmem:[#allocation8 + $0x208] sm:$0xff]
    %v1070 = vld [vmem:[#allocation8 + $0x210] sm:$0xff]
    %v1071 = vld [vmem:[#allocation8 + $0x218] sm:$0xff]
    %v1072 = vld [vmem:[#allocation8 + $0x220] sm:$0xff]
    %v1073 = vld [vmem:[#allocation8 + $0x228] sm:$0xff]
    %v1074 = vld [vmem:[#allocation8 + $0x230] sm:$0xff]
    %v1075 = vld [vmem:[#allocation8 + $0x238] sm:$0xff]
    %v1076 = vld [vmem:[#allocation8 + $0x240] sm:$0xff]
    %v1077 = vld [vmem:[#allocation8 + $0x248] sm:$0xff]
    %v1078 = vld [vmem:[#allocation8 + $0x250] sm:$0xff]
    %v1079 = vld [vmem:[#allocation8 + $0x258] sm:$0xff]
    %v1080 = vld [vmem:[#allocation8 + $0x260] sm:$0xff]
    %v1081 = vld [vmem:[#allocation8 + $0x268] sm:$0xff]
    %v1082 = vld [vmem:[#allocation8 + $0x270] sm:$0xff]
    %v1083 = vld [vmem:[#allocation8 + $0x278] sm:$0xff]
    %v1084 = vld [vmem:[#allocation8 + $0x280] sm:$0xff]
    %v1085 = vld [vmem:[#allocation8 + $0x288] sm:$0xff]
    %v1086 = vld [vmem:[#allocation8 + $0x290] sm:$0xff]
    %v1087 = vld [vmem:[#allocation8 + $0x298] sm:$0xff]
    %v1088 = vld [vmem:[#allocation8 + $0x2a0] sm:$0xff]
    %v1089 = vld [vmem:[#allocation8 + $0x2a8] sm:$0xff]
    %v1090 = vld [vmem:[#allocation8 + $0x2b0] sm:$0xff]
    %v1091 = vld [vmem:[#allocation8 + $0x2b8] sm:$0xff]
    %v1092 = vld [vmem:[#allocation8 + $0x2c0] sm:$0xff]
    %v1093 = vld [vmem:[#allocation8 + $0x2c8] sm:$0xff]
    %v1094 = vld [vmem:[#allocation8 + $0x2d0] sm:$0xff]
    %v1095 = vld [vmem:[#allocation8 + $0x2d8] sm:$0xff]
    %v1096 = vld [vmem:[#allocation8 + $0x2e0] sm:$0xff]
    %v1097 = vld [vmem:[#allocation8 + $0x2e8] sm:$0xff]
    %v1098 = vld [vmem:[#allocation8 + $0x2f0] sm:$0xff]
    %v1099 = vld [vmem:[#allocation8 + $0x2f8] sm:$0xff]
    %v1100 = vld [vmem:[#allocation8 + $0x300] sm:$0xff]
    %v1101 = vld [vmem:[#allocation8 + $0x308] sm:$0xff]
    %v1102 = vld [vmem:[#allocation8 + $0x310] sm:$0xff]
    %v1103 = vld [vmem:[#allocation8 + $0x318] sm:$0xff]
    %v1104 = vld [vmem:[#allocation8 + $0x320] sm:$0xff]
    %v1105 = vld [vmem:[#allocation8 + $0x328] sm:$0xff]
    %v1106 = vld [vmem:[#allocation8 + $0x330] sm:$0xff]
    %v1107 = vld [vmem:[#allocation8 + $0x338] sm:$0xff]
    %v1108 = vld [vmem:[#allocation8 + $0x340] sm:$0xff]
    %v1109 = vld [vmem:[#allocation8 + $0x348] sm:$0xff]
    %v1110 = vld [vmem:[#allocation8 + $0x350] sm:$0xff]
    %v1111 = vld [vmem:[#allocation8 + $0x358] sm:$0xff]
    %v1112 = vld [vmem:[#allocation8 + $0x360] sm:$0xff]
    %v1113 = vld [vmem:[#allocation8 + $0x368] sm:$0xff]
    %v1114 = vld [vmem:[#allocation8 + $0x370] sm:$0xff]
    %v1115 = vld [vmem:[#allocation8 + $0x378] sm:$0xff]
    %v1116 = vld [vmem:[#allocation8 + $0x380] sm:$0xff]
    %v1117 = vld [vmem:[#allocation8 + $0x388] sm:$0xff]
    %v1118 = vld [vmem:[#allocation8 + $0x390] sm:$0xff]
    %v1119 = vld [vmem:[#allocation8 + $0x398] sm:$0xff]
    %v1120 = vld [vmem:[#allocation8 + $0x3a0] sm:$0xff]
    %v1121 = vld [vmem:[#allocation8 + $0x3a8] sm:$0xff]
    %v1122 = vld [vmem:[#allocation8 + $0x3b0] sm:$0xff]
    %v1123 = vld [vmem:[#allocation8 + $0x3b8] sm:$0xff]
    %s1124 = scalar_lea.vmem [#allocation7], 1
    %v1125 = vld [vmem:[%s1124] ss:$2 sm:$0xff]
    %v1246 = vunpack.c.l.b16 %v1004
    %v1247 = vunpack.c.h.b16 %v1004
    %v1248 = vunpack.c.l.b16 %v1005
    %v1249 = vunpack.c.h.b16 %v1005
    %v1250 = vunpack.c.l.b16 %v1006
    %v1251 = vunpack.c.h.b16 %v1006
    %v1252 = vunpack.c.l.b16 %v1007
    %v1253 = vunpack.c.h.b16 %v1007
    %v1254 = vunpack.c.l.b16 %v1008
    %v1255 = vunpack.c.h.b16 %v1008
    %v1256 = vunpack.c.l.b16 %v1009
    %v1257 = vunpack.c.h.b16 %v1009
    %v1258 = vunpack.c.l.b16 %v1010
    %v1259 = vunpack.c.h.b16 %v1010
    %v1260 = vunpack.c.l.b16 %v1011
    %v1261 = vunpack.c.h.b16 %v1011
    %v1262 = vunpack.c.l.b16 %v1012
    %v1263 = vunpack.c.h.b16 %v1012
    %v1264 = vunpack.c.l.b16 %v1013
    %v1265 = vunpack.c.h.b16 %v1013
    %v1266 = vunpack.c.l.b16 %v1014
    %v1267 = vunpack.c.h.b16 %v1014
    %v1268 = vunpack.c.l.b16 %v1015
    %v1269 = vunpack.c.h.b16 %v1015
    %v1270 = vunpack.c.l.b16 %v1016
    %v1271 = vunpack.c.h.b16 %v1016
    %v1272 = vunpack.c.l.b16 %v1017
    %v1273 = vunpack.c.h.b16 %v1017
    %v1274 = vunpack.c.l.b16 %v1018
    %v1275 = vunpack.c.h.b16 %v1018
    %v1276 = vunpack.c.l.b16 %v1019
    %v1277 = vunpack.c.h.b16 %v1019
    %v1278 = vunpack.c.l.b16 %v1020
    %v1279 = vunpack.c.h.b16 %v1020
    %v1280 = vunpack.c.l.b16 %v1021
    %v1281 = vunpack.c.h.b16 %v1021
    %v1282 = vunpack.c.l.b16 %v1022
    %v1283 = vunpack.c.h.b16 %v1022
    %v1284 = vunpack.c.l.b16 %v1023
    %v1285 = vunpack.c.h.b16 %v1023
    %v1286 = vunpack.c.l.b16 %v1024
    %v1287 = vunpack.c.h.b16 %v1024
    %v1288 = vunpack.c.l.b16 %v1025
    %v1289 = vunpack.c.h.b16 %v1025
    %v1290 = vunpack.c.l.b16 %v1026
    %v1291 = vunpack.c.h.b16 %v1026
    %v1292 = vunpack.c.l.b16 %v1027
    %v1293 = vunpack.c.h.b16 %v1027
    %v1294 = vunpack.c.l.b16 %v1028
    %v1295 = vunpack.c.h.b16 %v1028
    %v1296 = vunpack.c.l.b16 %v1029
    %v1297 = vunpack.c.h.b16 %v1029
    %v1298 = vunpack.c.l.b16 %v1030
    %v1299 = vunpack.c.h.b16 %v1030
    %v1300 = vunpack.c.l.b16 %v1031
    %v1301 = vunpack.c.h.b16 %v1031
    %v1302 = vunpack.c.l.b16 %v1032
    %v1303 = vunpack.c.h.b16 %v1032
    %v1304 = vunpack.c.l.b16 %v1033
    %v1305 = vunpack.c.h.b16 %v1033
    %v1306 = vunpack.c.l.b16 %v1034
    %v1307 = vunpack.c.h.b16 %v1034
    %v1308 = vunpack.c.l.b16 %v1035
    %v1309 = vunpack.c.h.b16 %v1035
    %v1310 = vunpack.c.l.b16 %v1036
    %v1311 = vunpack.c.h.b16 %v1036
    %v1312 = vunpack.c.l.b16 %v1037
    %v1313 = vunpack.c.h.b16 %v1037
    %v1314 = vunpack.c.l.b16 %v1038
    %v1315 = vunpack.c.h.b16 %v1038
    %v1316 = vunpack.c.l.b16 %v1039
    %v1317 = vunpack.c.h.b16 %v1039
    %v1318 = vunpack.c.l.b16 %v1040
    %v1319 = vunpack.c.h.b16 %v1040
    %v1320 = vunpack.c.l.b16 %v1041
    %v1321 = vunpack.c.h.b16 %v1041
    %v1322 = vunpack.c.l.b16 %v1042
    %v1323 = vunpack.c.h.b16 %v1042
    %v1324 = vunpack.c.l.b16 %v1043
    %v1325 = vunpack.c.h.b16 %v1043
    %v1326 = vunpack.c.l.b16 %v1044
    %v1327 = vunpack.c.h.b16 %v1044
    %v1328 = vunpack.c.l.b16 %v1045
    %v1329 = vunpack.c.h.b16 %v1045
    %v1330 = vunpack.c.l.b16 %v1046
    %v1331 = vunpack.c.h.b16 %v1046
    %v1332 = vunpack.c.l.b16 %v1047
    %v1333 = vunpack.c.h.b16 %v1047
    %v1334 = vunpack.c.l.b16 %v1048
    %v1335 = vunpack.c.h.b16 %v1048
    %v1336 = vunpack.c.l.b16 %v1049
    %v1337 = vunpack.c.h.b16 %v1049
    %v1338 = vunpack.c.l.b16 %v1050
    %v1339 = vunpack.c.h.b16 %v1050
    %v1340 = vunpack.c.l.b16 %v1051
    %v1341 = vunpack.c.h.b16 %v1051
    %v1342 = vunpack.c.l.b16 %v1052
    %v1343 = vunpack.c.h.b16 %v1052
    %v1344 = vunpack.c.l.b16 %v1053
    %v1345 = vunpack.c.h.b16 %v1053
    %v1346 = vunpack.c.l.b16 %v1054
    %v1347 = vunpack.c.h.b16 %v1054
    %v1348 = vunpack.c.l.b16 %v1055
    %v1349 = vunpack.c.h.b16 %v1055
    %v1350 = vunpack.c.l.b16 %v1056
    %v1351 = vunpack.c.h.b16 %v1056
    %v1352 = vunpack.c.l.b16 %v1057
    %v1353 = vunpack.c.h.b16 %v1057
    %v1354 = vunpack.c.l.b16 %v1058
    %v1355 = vunpack.c.h.b16 %v1058
    %v1356 = vunpack.c.l.b16 %v1059
    %v1357 = vunpack.c.h.b16 %v1059
    %v1358 = vunpack.c.l.b16 %v1060
    %v1359 = vunpack.c.h.b16 %v1060
    %v1360 = vunpack.c.l.b16 %v1061
    %v1361 = vunpack.c.h.b16 %v1061
    %v1362 = vunpack.c.l.b16 %v1062
    %v1363 = vunpack.c.h.b16 %v1062
    %v1364 = vunpack.c.l.b16 %v1063
    %v1365 = vunpack.c.h.b16 %v1063
    %v1366 = vunpack.c.l.b16 %v1064
    %v1367 = vunpack.c.h.b16 %v1064
    %v1368 = vunpack.c.l.b16 %v1065
    %v1369 = vunpack.c.h.b16 %v1065
    %v1370 = vunpack.c.l.b16 %v1066
    %v1371 = vunpack.c.h.b16 %v1066
    %v1372 = vunpack.c.l.b16 %v1067
    %v1373 = vunpack.c.h.b16 %v1067
    %v1374 = vunpack.c.l.b16 %v1068
    %v1375 = vunpack.c.h.b16 %v1068
    %v1376 = vunpack.c.l.b16 %v1069
    %v1377 = vunpack.c.h.b16 %v1069
    %v1378 = vunpack.c.l.b16 %v1070
    %v1379 = vunpack.c.h.b16 %v1070
    %v1380 = vunpack.c.l.b16 %v1071
    %v1381 = vunpack.c.h.b16 %v1071
    %v1382 = vunpack.c.l.b16 %v1072
    %v1383 = vunpack.c.h.b16 %v1072
    %v1384 = vunpack.c.l.b16 %v1073
    %v1385 = vunpack.c.h.b16 %v1073
    %v1386 = vunpack.c.l.b16 %v1074
    %v1387 = vunpack.c.h.b16 %v1074
    %v1388 = vunpack.c.l.b16 %v1075
    %v1389 = vunpack.c.h.b16 %v1075
    %v1390 = vunpack.c.l.b16 %v1076
    %v1391 = vunpack.c.h.b16 %v1076
    %v1392 = vunpack.c.l.b16 %v1077
    %v1393 = vunpack.c.h.b16 %v1077
    %v1394 = vunpack.c.l.b16 %v1078
    %v1395 = vunpack.c.h.b16 %v1078
    %v1396 = vunpack.c.l.b16 %v1079
    %v1397 = vunpack.c.h.b16 %v1079
    %v1398 = vunpack.c.l.b16 %v1080
    %v1399 = vunpack.c.h.b16 %v1080
    %v1400 = vunpack.c.l.b16 %v1081
    %v1401 = vunpack.c.h.b16 %v1081
    %v1402 = vunpack.c.l.b16 %v1082
    %v1403 = vunpack.c.h.b16 %v1082
    %v1404 = vunpack.c.l.b16 %v1083
    %v1405 = vunpack.c.h.b16 %v1083
    %v1406 = vunpack.c.l.b16 %v1084
    %v1407 = vunpack.c.h.b16 %v1084
    %v1408 = vunpack.c.l.b16 %v1085
    %v1409 = vunpack.c.h.b16 %v1085
    %v1410 = vunpack.c.l.b16 %v1086
    %v1411 = vunpack.c.h.b16 %v1086
    %v1412 = vunpack.c.l.b16 %v1087
    %v1413 = vunpack.c.h.b16 %v1087
    %v1414 = vunpack.c.l.b16 %v1088
    %v1415 = vunpack.c.h.b16 %v1088
    %v1416 = vunpack.c.l.b16 %v1089
    %v1417 = vunpack.c.h.b16 %v1089
    %v1418 = vunpack.c.l.b16 %v1090
    %v1419 = vunpack.c.h.b16 %v1090
    %v1420 = vunpack.c.l.b16 %v1091
    %v1421 = vunpack.c.h.b16 %v1091
    %v1422 = vunpack.c.l.b16 %v1092
    %v1423 = vunpack.c.h.b16 %v1092
    %v1424 = vunpack.c.l.b16 %v1093
    %v1425 = vunpack.c.h.b16 %v1093
    %v1426 = vunpack.c.l.b16 %v1094
    %v1427 = vunpack.c.h.b16 %v1094
    %v1428 = vunpack.c.l.b16 %v1095
    %v1429 = vunpack.c.h.b16 %v1095
    %v1430 = vunpack.c.l.b16 %v1096
    %v1431 = vunpack.c.h.b16 %v1096
    %v1432 = vunpack.c.l.b16 %v1097
    %v1433 = vunpack.c.h.b16 %v1097
    %v1434 = vunpack.c.l.b16 %v1098
    %v1435 = vunpack.c.h.b16 %v1098
    %v1436 = vunpack.c.l.b16 %v1099
    %v1437 = vunpack.c.h.b16 %v1099
    %v1438 = vunpack.c.l.b16 %v1100
    %v1439 = vunpack.c.h.b16 %v1100
    %v1440 = vunpack.c.l.b16 %v1101
    %v1441 = vunpack.c.h.b16 %v1101
    %v1442 = vunpack.c.l.b16 %v1102
    %v1443 = vunpack.c.h.b16 %v1102
    %v1444 = vunpack.c.l.b16 %v1103
    %v1445 = vunpack.c.h.b16 %v1103
    %v1446 = vunpack.c.l.b16 %v1104
    %v1447 = vunpack.c.h.b16 %v1104
    %v1448 = vunpack.c.l.b16 %v1105
    %v1449 = vunpack.c.h.b16 %v1105
    %v1450 = vunpack.c.l.b16 %v1106
    %v1451 = vunpack.c.h.b16 %v1106
    %v1452 = vunpack.c.l.b16 %v1107
    %v1453 = vunpack.c.h.b16 %v1107
    %v1454 = vunpack.c.l.b16 %v1108
    %v1455 = vunpack.c.h.b16 %v1108
    %v1456 = vunpack.c.l.b16 %v1109
    %v1457 = vunpack.c.h.b16 %v1109
    %v1458 = vunpack.c.l.b16 %v1110
    %v1459 = vunpack.c.h.b16 %v1110
    %v1460 = vunpack.c.l.b16 %v1111
    %v1461 = vunpack.c.h.b16 %v1111
    %v1462 = vunpack.c.l.b16 %v1112
    %v1463 = vunpack.c.h.b16 %v1112
    %v1464 = vunpack.c.l.b16 %v1113
    %v1465 = vunpack.c.h.b16 %v1113
    %v1466 = vunpack.c.l.b16 %v1114
    %v1467 = vunpack.c.h.b16 %v1114
    %v1468 = vunpack.c.l.b16 %v1115
    %v1469 = vunpack.c.h.b16 %v1115
    %v1470 = vunpack.c.l.b16 %v1116
    %v1471 = vunpack.c.h.b16 %v1116
    %v1472 = vunpack.c.l.b16 %v1117
    %v1473 = vunpack.c.h.b16 %v1117
    %v1474 = vunpack.c.l.b16 %v1118
    %v1475 = vunpack.c.h.b16 %v1118
    %v1476 = vunpack.c.l.b16 %v1119
    %v1477 = vunpack.c.h.b16 %v1119
    %v1478 = vunpack.c.l.b16 %v1120
    %v1479 = vunpack.c.h.b16 %v1120
    %v1480 = vunpack.c.l.b16 %v1121
    %v1481 = vunpack.c.h.b16 %v1121
    %v1482 = vunpack.c.l.b16 %v1122
    %v1483 = vunpack.c.h.b16 %v1122
    %v1484 = vunpack.c.l.b16 %v1123
    %v1485 = vunpack.c.h.b16 %v1123
    %v1486 = vpack.c.b16 %v1254, %v1246
    %v1487 = vpack.c.b16 %v1255, %v1247
    %v1488 = vpack.c.b16 %v1256, %v1248
    %v1489 = vpack.c.b16 %v1257, %v1249
    %v1490 = vpack.c.b16 %v1258, %v1250
    %v1491 = vpack.c.b16 %v1259, %v1251
    %v1492 = vpack.c.b16 %v1260, %v1252
    %v1493 = vpack.c.b16 %v1261, %v1253
    %v1494 = vpack.c.b16 %v1270, %v1262
    %v1495 = vpack.c.b16 %v1271, %v1263
    %v1496 = vpack.c.b16 %v1272, %v1264
    %v1497 = vpack.c.b16 %v1273, %v1265
    %v1498 = vpack.c.b16 %v1274, %v1266
    %v1499 = vpack.c.b16 %v1275, %v1267
    %v1500 = vpack.c.b16 %v1276, %v1268
    %v1501 = vpack.c.b16 %v1277, %v1269
    %v1502 = vpack.c.b16 %v1286, %v1278
    %v1503 = vpack.c.b16 %v1287, %v1279
    %v1504 = vpack.c.b16 %v1288, %v1280
    %v1505 = vpack.c.b16 %v1289, %v1281
    %v1506 = vpack.c.b16 %v1290, %v1282
    %v1507 = vpack.c.b16 %v1291, %v1283
    %v1508 = vpack.c.b16 %v1292, %v1284
    %v1509 = vpack.c.b16 %v1293, %v1285
    %v1510 = vpack.c.b16 %v1302, %v1294
    %v1511 = vpack.c.b16 %v1303, %v1295
    %v1512 = vpack.c.b16 %v1304, %v1296
    %v1513 = vpack.c.b16 %v1305, %v1297
    %v1514 = vpack.c.b16 %v1306, %v1298
    %v1515 = vpack.c.b16 %v1307, %v1299
    %v1516 = vpack.c.b16 %v1308, %v1300
    %v1517 = vpack.c.b16 %v1309, %v1301
    %v1518 = vpack.c.b16 %v1318, %v1310
    %v1519 = vpack.c.b16 %v1319, %v1311
    %v1520 = vpack.c.b16 %v1320, %v1312
    %v1521 = vpack.c.b16 %v1321, %v1313
    %v1522 = vpack.c.b16 %v1322, %v1314
    %v1523 = vpack.c.b16 %v1323, %v1315
    %v1524 = vpack.c.b16 %v1324, %v1316
    %v1525 = vpack.c.b16 %v1325, %v1317
    %v1526 = vpack.c.b16 %v1334, %v1326
    %v1527 = vpack.c.b16 %v1335, %v1327
    %v1528 = vpack.c.b16 %v1336, %v1328
    %v1529 = vpack.c.b16 %v1337, %v1329
    %v1530 = vpack.c.b16 %v1338, %v1330
    %v1531 = vpack.c.b16 %v1339, %v1331
    %v1532 = vpack.c.b16 %v1340, %v1332
    %v1533 = vpack.c.b16 %v1341, %v1333
    %v1534 = vpack.c.b16 %v1350, %v1342
    %v1535 = vpack.c.b16 %v1351, %v1343
    %v1536 = vpack.c.b16 %v1352, %v1344
    %v1537 = vpack.c.b16 %v1353, %v1345
    %v1538 = vpack.c.b16 %v1354, %v1346
    %v1539 = vpack.c.b16 %v1355, %v1347
    %v1540 = vpack.c.b16 %v1356, %v1348
    %v1541 = vpack.c.b16 %v1357, %v1349
    %v1542 = vpack.c.b16 %v1366, %v1358
    %v1543 = vpack.c.b16 %v1367, %v1359
    %v1544 = vpack.c.b16 %v1368, %v1360
    %v1545 = vpack.c.b16 %v1369, %v1361
    %v1546 = vpack.c.b16 %v1370, %v1362
    %v1547 = vpack.c.b16 %v1371, %v1363
    %v1548 = vpack.c.b16 %v1372, %v1364
    %v1549 = vpack.c.b16 %v1373, %v1365
    %v1550 = vpack.c.b16 %v1382, %v1374
    %v1551 = vpack.c.b16 %v1383, %v1375
    %v1552 = vpack.c.b16 %v1384, %v1376
    %v1553 = vpack.c.b16 %v1385, %v1377
    %v1554 = vpack.c.b16 %v1386, %v1378
    %v1555 = vpack.c.b16 %v1387, %v1379
    %v1556 = vpack.c.b16 %v1388, %v1380
    %v1557 = vpack.c.b16 %v1389, %v1381
    %v1558 = vpack.c.b16 %v1398, %v1390
    %v1559 = vpack.c.b16 %v1399, %v1391
    %v1560 = vpack.c.b16 %v1400, %v1392
    %v1561 = vpack.c.b16 %v1401, %v1393
    %v1562 = vpack.c.b16 %v1402, %v1394
    %v1563 = vpack.c.b16 %v1403, %v1395
    %v1564 = vpack.c.b16 %v1404, %v1396
    %v1565 = vpack.c.b16 %v1405, %v1397
    %v1566 = vpack.c.b16 %v1414, %v1406
    %v1567 = vpack.c.b16 %v1415, %v1407
    %v1568 = vpack.c.b16 %v1416, %v1408
    %v1569 = vpack.c.b16 %v1417, %v1409
    %v1570 = vpack.c.b16 %v1418, %v1410
    %v1571 = vpack.c.b16 %v1419, %v1411
    %v1572 = vpack.c.b16 %v1420, %v1412
    %v1573 = vpack.c.b16 %v1421, %v1413
    %v1574 = vpack.c.b16 %v1430, %v1422
    %v1575 = vpack.c.b16 %v1431, %v1423
    %v1576 = vpack.c.b16 %v1432, %v1424
    %v1577 = vpack.c.b16 %v1433, %v1425
    %v1578 = vpack.c.b16 %v1434, %v1426
    %v1579 = vpack.c.b16 %v1435, %v1427
    %v1580 = vpack.c.b16 %v1436, %v1428
    %v1581 = vpack.c.b16 %v1437, %v1429
    %v1582 = vpack.c.b16 %v1446, %v1438
    %v1583 = vpack.c.b16 %v1447, %v1439
    %v1584 = vpack.c.b16 %v1448, %v1440
    %v1585 = vpack.c.b16 %v1449, %v1441
    %v1586 = vpack.c.b16 %v1450, %v1442
    %v1587 = vpack.c.b16 %v1451, %v1443
    %v1588 = vpack.c.b16 %v1452, %v1444
    %v1589 = vpack.c.b16 %v1453, %v1445
    %v1590 = vpack.c.b16 %v1462, %v1454
    %v1591 = vpack.c.b16 %v1463, %v1455
    %v1592 = vpack.c.b16 %v1464, %v1456
    %v1593 = vpack.c.b16 %v1465, %v1457
    %v1594 = vpack.c.b16 %v1466, %v1458
    %v1595 = vpack.c.b16 %v1467, %v1459
    %v1596 = vpack.c.b16 %v1468, %v1460
    %v1597 = vpack.c.b16 %v1469, %v1461
    %v1598 = vpack.c.b16 %v1478, %v1470
    %v1599 = vpack.c.b16 %v1479, %v1471
    %v1600 = vpack.c.b16 %v1480, %v1472
    %v1601 = vpack.c.b16 %v1481, %v1473
    %v1602 = vpack.c.b16 %v1482, %v1474
    %v1603 = vpack.c.b16 %v1483, %v1475
    %v1604 = vpack.c.b16 %v1484, %v1476
    %v1605 = vpack.c.b16 %v1485, %v1477
    %v1727 = vlaneseq
    %v1728 = vshrl.u32 %v1727, 7
    %v1729 = vsub.s32 0, %v1728
    %v1730 = vrot.slane %v1125, %v1729
    %v1731 = vlaneseq
    %v1732 = vshrl.u32 %v1731, 7
    %v1733 = vsub.s32 1, %v1732
    %v1734 = vrot.slane %v1125, %v1733
    %v1735 = vlaneseq
    %v1736 = vshrl.u32 %v1735, 7
    %v1737 = vsub.s32 2, %v1736
    %v1738 = vrot.slane %v1125, %v1737
    %v1739 = vlaneseq
    %v1740 = vshrl.u32 %v1739, 7
    %v1741 = vsub.s32 3, %v1740
    %v1742 = vrot.slane %v1125, %v1741
    %v1743 = vlaneseq
    %v1744 = vshrl.u32 %v1743, 7
    %v1745 = vsub.s32 4, %v1744
    %v1746 = vrot.slane %v1125, %v1745
    %v1747 = vlaneseq
    %v1748 = vshrl.u32 %v1747, 7
    %v1749 = vsub.s32 5, %v1748
    %v1750 = vrot.slane %v1125, %v1749
    %v1751 = vlaneseq
    %v1752 = vshrl.u32 %v1751, 7
    %v1753 = vsub.s32 6, %v1752
    %v1754 = vrot.slane %v1125, %v1753
    %v1755 = vlaneseq
    %v1756 = vshrl.u32 %v1755, 7
    %v1757 = vsub.s32 7, %v1756
    %v1758 = vrot.slane %v1125, %v1757
    %vm1767 = vcmask 916480
    %v1769 = vsel %vm1767, %v1003, 0
    %1771 = vmatprep.subr.bf16.mxu0 %v1487
    %1772 = vmatpush1.bf16.msra.mxu0 %v1486
    %1773 = vmatprep.subr.bf16.mxu0 %v1495
    %1774 = vmatpush1.bf16.msra.mxu0 %v1494
    %1775 = vmatprep.subr.bf16.mxu0 %v1503
    %1776 = vmatpush1.bf16.msra.mxu0 %v1502
    %1777 = vmatprep.subr.bf16.mxu0 %v1511
    %1778 = vmatpush1.bf16.msra.mxu0 %v1510
    %1779 = vmatprep.subr.bf16.mxu0 %v1519
    %1780 = vmatpush1.bf16.msra.mxu0 %v1518
    %1781 = vmatprep.subr.bf16.mxu0 %v1527
    %1782 = vmatpush1.bf16.msra.mxu0 %v1526
    %1783 = vmatprep.subr.bf16.mxu0 %v1535
    %1784 = vmatpush1.bf16.msra.mxu0 %v1534
    %1785 = vmatprep.subr.bf16.mxu0 %v1543
    %1786 = vmatpush1.bf16.msra.mxu0 %v1542
    %1787 = vmatprep.subr.bf16.mxu0 %v1551
    %1788 = vmatpush1.bf16.msra.mxu0 %v1550
    %1789 = vmatprep.subr.bf16.mxu0 %v1559
    %1790 = vmatpush1.bf16.msra.mxu0 %v1558
    %1791 = vmatprep.subr.bf16.mxu0 %v1567
    %1792 = vmatpush1.bf16.msra.mxu0 %v1566
    %1793 = vmatprep.subr.bf16.mxu0 %v1575
    %1794 = vmatpush1.bf16.msra.mxu0 %v1574
    %1795 = vmatprep.subr.bf16.mxu0 %v1583
    %1796 = vmatpush1.bf16.msra.mxu0 %v1582
    %1797 = vmatprep.subr.bf16.mxu0 %v1591
    %1798 = vmatpush1.bf16.msra.mxu0 %v1590
    %1799 = vmatprep.subr.bf16.mxu0 %v1599
    %1800 = vmatpush1.bf16.msra.mxu0 %v1598
    %1801 = vmatprep.subr.bf16.mxu0 0
    %1802 = vmatpush1.bf16.msra.mxu0 0
    %1803 = vmatprep.mubr.f32.mxu0 %v1769
    %1804 = vmatmul.mubr.f32.gmra.mrb[0].mxu0 %v1002
    %v1805 = vpop.f32.mrb[0].mxu0
    %v1806 = vadd.f32 %v1730, %v1805
    %v1807 = vpop.f32.mrb[0].mxu0
    %v1808 = vadd.f32 %v1734, %v1807
    %1809 = vdwg.mxu0
    %1810 = vmatprep.subr.bf16.mxu0 %v1489
    %1811 = vmatpush1.bf16.msra.mxu0 %v1488
    %1812 = vmatprep.subr.bf16.mxu0 %v1497
    %1813 = vmatpush1.bf16.msra.mxu0 %v1496
    %1814 = vmatprep.subr.bf16.mxu0 %v1505
    %1815 = vmatpush1.bf16.msra.mxu0 %v1504
    %1816 = vmatprep.subr.bf16.mxu0 %v1513
    %1817 = vmatpush1.bf16.msra.mxu0 %v1512
    %1818 = vmatprep.subr.bf16.mxu0 %v1521
    %1819 = vmatpush1.bf16.msra.mxu0 %v1520
    %1820 = vmatprep.subr.bf16.mxu0 %v1529
    %1821 = vmatpush1.bf16.msra.mxu0 %v1528
    %1822 = vmatprep.subr.bf16.mxu0 %v1537
    %1823 = vmatpush1.bf16.msra.mxu0 %v1536
    %1824 = vmatprep.subr.bf16.mxu0 %v1545
    %1825 = vmatpush1.bf16.msra.mxu0 %v1544
    %1826 = vmatprep.subr.bf16.mxu0 %v1553
    %1827 = vmatpush1.bf16.msra.mxu0 %v1552
    %1828 = vmatprep.subr.bf16.mxu0 %v1561
    %1829 = vmatpush1.bf16.msra.mxu0 %v1560
    %1830 = vmatprep.subr.bf16.mxu0 %v1569
    %1831 = vmatpush1.bf16.msra.mxu0 %v1568
    %1832 = vmatprep.subr.bf16.mxu0 %v1577
    %1833 = vmatpush1.bf16.msra.mxu0 %v1576
    %1834 = vmatprep.subr.bf16.mxu0 %v1585
    %1835 = vmatpush1.bf16.msra.mxu0 %v1584
    %1836 = vmatprep.subr.bf16.mxu0 %v1593
    %1837 = vmatpush1.bf16.msra.mxu0 %v1592
    %1838 = vmatprep.subr.bf16.mxu0 %v1601
    %1839 = vmatpush1.bf16.msra.mxu0 %v1600
    %1840 = vmatprep.subr.bf16.mxu0 0
    %1841 = vmatpush1.bf16.msra.mxu0 0
    %1842 = vmatprep.mubr.f32.mxu0 %v1769
    %1843 = vmatmul.mubr.f32.gmra.mrb[0].mxu0 %v1002
    %v1844 = vpop.f32.mrb[0].mxu0
    %v1845 = vadd.f32 %v1738, %v1844
    %v1846 = vpop.f32.mrb[0].mxu0
    %v1847 = vadd.f32 %v1742, %v1846
    %1848 = vdwg.mxu0
    %1849 = vmatprep.subr.bf16.mxu0 %v1491
    %1850 = vmatpush1.bf16.msra.mxu0 %v1490
    %1851 = vmatprep.subr.bf16.mxu0 %v1499
    %1852 = vmatpush1.bf16.msra.mxu0 %v1498
    %1853 = vmatprep.subr.bf16.mxu0 %v1507
    %1854 = vmatpush1.bf16.msra.mxu0 %v1506
    %1855 = vmatprep.subr.bf16.mxu0 %v1515
    %1856 = vmatpush1.bf16.msra.mxu0 %v1514
    %1857 = vmatprep.subr.bf16.mxu0 %v1523
    %1858 = vmatpush1.bf16.msra.mxu0 %v1522
    %1859 = vmatprep.subr.bf16.mxu0 %v1531
    %1860 = vmatpush1.bf16.msra.mxu0 %v1530
    %1861 = vmatprep.subr.bf16.mxu0 %v1539
    %1862 = vmatpush1.bf16.msra.mxu0 %v1538
    %1863 = vmatprep.subr.bf16.mxu0 %v1547
    %1864 = vmatpush1.bf16.msra.mxu0 %v1546
    %1865 = vmatprep.subr.bf16.mxu0 %v1555
    %1866 = vmatpush1.bf16.msra.mxu0 %v1554
    %1867 = vmatprep.subr.bf16.mxu0 %v1563
    %1868 = vmatpush1.bf16.msra.mxu0 %v1562
    %1869 = vmatprep.subr.bf16.mxu0 %v1571
    %1870 = vmatpush1.bf16.msra.mxu0 %v1570
    %1871 = vmatprep.subr.bf16.mxu0 %v1579
    %1872 = vmatpush1.bf16.msra.mxu0 %v1578
    %1873 = vmatprep.subr.bf16.mxu0 %v1587
    %1874 = vmatpush1.bf16.msra.mxu0 %v1586
    %1875 = vmatprep.subr.bf16.mxu0 %v1595
    %1876 = vmatpush1.bf16.msra.mxu0 %v1594
    %1877 = vmatprep.subr.bf16.mxu0 %v1603
    %1878 = vmatpush1.bf16.msra.mxu0 %v1602
    %1879 = vmatprep.subr.bf16.mxu0 0
    %1880 = vmatpush1.bf16.msra.mxu0 0
    %1881 = vmatprep.mubr.f32.mxu0 %v1769
    %1882 = vmatmul.mubr.f32.gmra.mrb[0].mxu0 %v1002
    %v1883 = vpop.f32.mrb[0].mxu0
    %v1884 = vadd.f32 %v1746, %v1883
    %v1885 = vpop.f32.mrb[0].mxu0
    %v1886 = vadd.f32 %v1750, %v1885
    %1887 = vdwg.mxu0
    %1888 = vmatprep.subr.bf16.mxu0 %v1493
    %1889 = vmatpush1.bf16.msra.mxu0 %v1492
    %1890 = vmatprep.subr.bf16.mxu0 %v1501
    %1891 = vmatpush1.bf16.msra.mxu0 %v1500
    %1892 = vmatprep.subr.bf16.mxu0 %v1509
    %1893 = vmatpush1.bf16.msra.mxu0 %v1508
    %1894 = vmatprep.subr.bf16.mxu0 %v1517
    %1895 = vmatpush1.bf16.msra.mxu0 %v1516
    %1896 = vmatprep.subr.bf16.mxu0 %v1525
    %1897 = vmatpush1.bf16.msra.mxu0 %v1524
    %1898 = vmatprep.subr.bf16.mxu0 %v1533
    %1899 = vmatpush1.bf16.msra.mxu0 %v1532
    %1900 = vmatprep.subr.bf16.mxu0 %v1541
    %1901 = vmatpush1.bf16.msra.mxu0 %v1540
    %1902 = vmatprep.subr.bf16.mxu0 %v1549
    %1903 = vmatpush1.bf16.msra.mxu0 %v1548
    %1904 = vmatprep.subr.bf16.mxu0 %v1557
    %1905 = vmatpush1.bf16.msra.mxu0 %v1556
    %1906 = vmatprep.subr.bf16.mxu0 %v1565
    %1907 = vmatpush1.bf16.msra.mxu0 %v1564
    %1908 = vmatprep.subr.bf16.mxu0 %v1573
    %1909 = vmatpush1.bf16.msra.mxu0 %v1572
    %1910 = vmatprep.subr.bf16.mxu0 %v1581
    %1911 = vmatpush1.bf16.msra.mxu0 %v1580
    %1912 = vmatprep.subr.bf16.mxu0 %v1589
    %1913 = vmatpush1.bf16.msra.mxu0 %v1588
    %1914 = vmatprep.subr.bf16.mxu0 %v1597
    %1915 = vmatpush1.bf16.msra.mxu0 %v1596
    %1916 = vmatprep.subr.bf16.mxu0 %v1605
    %1917 = vmatpush1.bf16.msra.mxu0 %v1604
    %1918 = vmatprep.subr.bf16.mxu0 0
    %1919 = vmatpush1.bf16.msra.mxu0 0
    %1920 = vmatprep.mubr.f32.mxu0 %v1769
    %1921 = vmatmul.mubr.f32.gmra.mrb[0].mxu0 %v1002
    %v1922 = vpop.f32.mrb[0].mxu0
    %v1923 = vadd.f32 %v1754, %v1922
    %v1924 = vpop.f32.mrb[0].mxu0
    %v1925 = vadd.f32 %v1758, %v1924
    %1926 = vdwg.mxu0
    %v1935 = vcombine.low %v1806, %v1808
    %v1936 = vcombine.low %v1845, %v1847
    %v1937 = vcombine.low %v1884, %v1886
    %v1938 = vcombine.low %v1923, %v1925
    %v1940 = vunpack.c.l.s4 1966171168
    %v1941 = vunpack.c.0.s8 %v1940
    %v1942 = vlaneseq
    %v1943 = vshrl.u32 %v1942, 7
    %v1944 = vsub.s32 %v1941, %v1943
    %v1945 = vrot.slane %v1935, %v1944
    %v1947 = vunpack.c.l.s4 1966171168
    %v1948 = vunpack.c.0.s8 %v1947
    %v1949 = vlaneseq
    %v1950 = vshrl.u32 %v1949, 7
    %v1951 = vsub.s32 %v1948, %v1950
    %v1952 = vrot.slane %v1936, %v1951
    %v1954 = vunpack.c.l.s4 1966171168
    %v1955 = vunpack.c.0.s8 %v1954
    %v1956 = vlaneseq
    %v1957 = vshrl.u32 %v1956, 7
    %v1958 = vsub.s32 %v1955, %v1957
    %v1959 = vrot.slane %v1937, %v1958
    %v1961 = vunpack.c.l.s4 1966171168
    %v1962 = vunpack.c.0.s8 %v1961
    %v1963 = vlaneseq
    %v1964 = vshrl.u32 %v1963, 7
    %v1965 = vsub.s32 %v1962, %v1964
    %v1966 = vrot.slane %v1938, %v1965
    %v1967 = vcombine.low %v1945, %v1952
    %v1968 = vcombine.low %v1959, %v1966
    %v1970 = vunpack.c.l.s4 1966171168
    %v1971 = vunpack.c.0.s8 %v1970
    %v1972 = vlaneseq
    %v1973 = vshrl.u32 %v1972, 7
    %v1974 = vsub.s32 %v1971, %v1973
    %v1975 = vrot.slane %v1967, %v1974
    %v1977 = vunpack.c.l.s4 1966171168
    %v1978 = vunpack.c.0.s8 %v1977
    %v1979 = vlaneseq
    %v1980 = vshrl.u32 %v1979, 7
    %v1981 = vsub.s32 %v1978, %v1980
    %v1982 = vrot.slane %v1968, %v1981
    %v1983 = vcombine.low %v1975, %v1982
    %v1985 = vlaneseq
    %vm1986 = vcmp.ge.s32.totalorder %v1985, 0
    %vm1987 = vcmp.lt.s32.totalorder %v1985, 960
    %vm1988 = vmand %vm1986, %vm1987
    %1989 = vst.msk [vmem:[#allocation10] sm:$0xff] %vm1988, %v1983
    // Predicated region
    $region34: #{conv_relu_conv.1} parent=1 // pred_check
      _
    $region35: #{conv_relu_conv.1} parent=1 // pred_check_branch
      %1991 = sbr.rel (0) target = $region37
    $region36: #{conv_relu_conv.1} parent=1 // pred_region
      %s1993 = ssub.s32 128, 128
      %1994 = vsyncadd [#allocation4], %s1993
      %s1996 = sshll.u32 [#allocation10], 4
      %s1997 = int_to_ptr.vmem [resolvable:$true] %s1996
      %1999 = dma.vmem_to_hbm [thread:$0]  %s1997, 128, %s4, [#allocation4]
    $region37: #{conv_relu_conv.1} parent=1 // pred_fallthru
      _
    // Predicated region
    $region38: #{conv_relu_conv.1} parent=1 // pred_check
      _
    $region39: #{conv_relu_conv.1} parent=1 // pred_check_branch
      %2001 = sbr.rel (0) target = $region41
    $region40: #{conv_relu_conv.1} parent=1 // pred_region
      %2002 = dma.done [#allocation4], 128
    $region41: #{conv_relu_conv.1} parent=1 // pred_fallthru
      _
    %2003 = vsyncpa [#allocation3], 1
    %2004 = vsyncpa [#allocation6], 1
    %2005 = vsyncpa [#allocation9], 1
    %2006 = vsyncpa [#allocation4], 1

</llo_original>
